<compile_context>
chip_gen: v6e
topology: v6e:2x2x1
jax: 0.10.0
libtpu: 0.0.40
codegen_flags: <defaults>
</compile_context>

<pallas_src>
import jax
import jax.numpy as jnp
from jax.experimental import pallas as pl
from jax.experimental.pallas import tpu as pltpu

# ---------------- config (mirrors `args` of the PyTorch module) ----------------
EMBED_SIZE = 20          # vocab size
EMBED_DIM  = 16          # embedding dim
HIDDEN     = 32          # hidden_size (total, bidirectional)
H2         = HIDDEN // 2 # per-direction hidden (16)
NUM_TAGS   = 5
BATCH      = 2
SEQ        = 8

GLANE   = 128            # single packed gate lane group: 4 gates x 2 dirs x H2 = 128 lanes
GATES   = 4              # kernel gate order: i, f, o, g
GSTRIDE = GLANE // GATES # 32 lanes per gate group (fwd units +0:16, bwd units +16:32)
BP      = 8              # batch padded to the 8-sublane tile

assert 2 * H2 <= GSTRIDE and GATES * GSTRIDE == GLANE


# =============================== fused Pallas kernel ===============================

def bilstm_crf_fused_kernel(ids_ref, wx_ref, whh_ref, h0_ref, c0_ref,
                            wl_ref, blin_ref, tags_ref, mask_ref,
                            trans_ref, start_ref, end_ref,
                            loss_ref, hsc_ref):
    f32 = jnp.float32
    TB = ids_ref.shape[0]          # T * Bp (time-major, row = t*Bp + b)
    Bp = h0_ref.shape[0]           # 8
    GL = whh_ref.shape[0]          # 128 (packed gate lane group)
    GS = GL // GATES               # 32
    T = TB // Bp
    V = wx_ref.shape[0]
    K = trans_ref.shape[0]

    # ---- prologue: embedding + input projections + biases folded into ONE matmul ----
    ids = ids_ref[...]                                                          # (T*Bp, 1) i32
    onehot_v = (ids == jax.lax.broadcasted_iota(jnp.int32, (TB, V), 1)).astype(f32)
    gx_all = jnp.dot(onehot_v, wx_ref[...], preferred_element_type=f32)         # (T*Bp, 2*GL)

    whh = whh_ref[...]             # (128, 128) = 16 vregs, stays resident across the loop

    # ---- fused fwd/bwd recurrence: ONE recurrent matmul per step ----
    # lane layout of z / sig:  i 0:32 | f 32:64 | o 64:96 | g 96:128  (fwd at +0:16,
    # bwd at +16:32 inside each 32-lane group); h/c live in lanes 0:32 (fwd 0:16, bwd 16:32).
    h = h0_ref[...]                                                             # (Bp, GL)
    c = c0_ref[...]
    for t in range(T):
        gx = (gx_all[t * Bp:(t + 1) * Bp, 0:GL] +                   # fwd input at time t
              gx_all[(T - 1 - t) * Bp:(T - t) * Bp, GL:2 * GL])     # bwd input at time T-1-t
        z = gx + jnp.dot(h, whh, preferred_element_type=f32)                    # (Bp, GL)
        sig = jax.nn.sigmoid(z)                              # i/f/o valid in lanes 0:96
        g_al = jnp.tanh(pltpu.roll(z, GL - 3 * GS, axis=1))  # g preacts -> lanes 0:32, tanh
        f_al = pltpu.roll(sig, GL - 1 * GS, axis=1)          # f gate   -> lanes 0:32
        o_al = pltpu.roll(sig, GL - 2 * GS, axis=1)          # o gate   -> lanes 0:32
        c = f_al * c + sig * g_al      # lanes 0:32 exact; lanes 32:128 hold bounded junk
        h = o_al * jnp.tanh(c)         # that is never read (whh / wl rows there are zero)
        hsc_ref[t * Bp:(t + 1) * Bp, 0:GL] = h                      # fwd(t) copy
        hsc_ref[(T - 1 - t) * Bp:(T - t) * Bp, GL:2 * GL] = h       # bwd(T-1-t) copy

    # ---- output projection (dropout = identity): ONE (T*Bp, 2*GL) @ (2*GL, K) matmul ----
    logits_all = (jnp.dot(hsc_ref[...], wl_ref[...], preferred_element_type=f32)
                  + blin_ref[...])                                              # (T*Bp, K)

    # =============== CRF negative log-likelihood (fused) ===============
    trans = trans_ref[...]             # (K, K)
    start = start_ref[...]             # (1, K)
    end = end_ref[...]                 # (1, K)
    mask_all = mask_ref[...]           # (T*Bp, 1) f32, time-major
    tags_col = tags_ref[...]           # (T*Bp, 1) i32, time-major
    oh_all = (tags_col == jax.lax.broadcasted_iota(jnp.int32, (TB, K), 1)).astype(f32)

    # -------- numerator: gold-path score, vectorized over time (lane-axis reductions) -----
    gold_emit = logits_all * oh_all * mask_all                                  # (T*Bp, K)
    emit_sum = jnp.sum(jnp.sum(gold_emit.reshape(T, Bp, K), axis=0),
                       axis=-1, keepdims=True)                                  # (Bp, 1)

    oh_cur = oh_all[0:(T - 1) * Bp, :]
    oh_nxt = oh_all[Bp:TB, :]
    sel = jnp.dot(oh_cur, trans, preferred_element_type=f32)    # row r -> trans[tag_r, :]
    tr_gold = sel * oh_nxt * mask_all[Bp:TB, :]                                 # ((T-1)*Bp, K)
    tr_sum = jnp.sum(jnp.sum(tr_gold.reshape(T - 1, Bp, K), axis=0),
                     axis=-1, keepdims=True)                                    # (Bp, 1)

    mask_nxt = jnp.concatenate([mask_all[Bp:TB, :], jnp.zeros((Bp, 1), f32)], axis=0)
    last_oh = jnp.sum((oh_all * (mask_all * (1.0 - mask_nxt))).reshape(T, Bp, K),
                      axis=0)                                                   # (Bp, K)

    start_sel = jnp.sum(start * oh_all[0:Bp, :], axis=-1, keepdims=True)        # (Bp, 1)
    end_sel = jnp.sum(end * last_oh, axis=-1, keepdims=True)
    score = start_sel + emit_sum + tr_sum + end_sel                             # (Bp, 1)

    # -------- denominator: forward-algorithm partition function.
    # logsumexp_i(alpha[b,i] + trans[i,j]) computed as m + log(exp(alpha - m) @ exp(trans)):
    # only lane-axis max / tiny MXU op per step, no (Bp,K,K) temporaries; exp(trans) hoisted.
    exp_trans = jnp.exp(trans)
    alpha = start + logits_all[0:Bp, :]                                         # (Bp, K)
    for t in range(1, T):
        emit_t = logits_all[t * Bp:(t + 1) * Bp, :]
        m = jnp.max(alpha, axis=-1, keepdims=True)
        s = jnp.dot(jnp.exp(alpha - m), exp_trans, preferred_element_type=f32)  # (Bp, K)
        new_alpha = emit_t + m + jnp.log(s)
        m_t = mask_all[t * Bp:(t + 1) * Bp, :]
        alpha = new_alpha * m_t + alpha * (1.0 - m_t)
    stops = alpha + end
    mx = jnp.max(stops, axis=-1, keepdims=True)
    denom = mx + jnp.log(jnp.sum(jnp.exp(stops - mx), axis=-1, keepdims=True))  # (Bp, 1)

    # Padded batch rows (mask[:,0] == 0) are excluded from the loss; real sequences are
    # assumed non-empty (mask[:,0] == 1), same as AllenNLP.
    bvalid = mask_all[0:Bp, :]
    loss_ref[0, 0] = -jnp.sum((score - denom) * bvalid)


# =============================== wrappers / glue ===============================

def _vmem():
    return pl.BlockSpec(memory_space=pltpu.MemorySpace.VMEM)


def pack_params(params):
    """Pre-pack weights into the single-128-lane gate layout.

    Kernel gate order (i, f, o, g), 32 lanes per gate group, fwd units at +0:16,
    bwd units at +16:32:
      * wx  (V, 2*GLANE): fused embedding @ W_ih + bias table.  Lanes 0:128 hold the
        forward-direction input preactivations, lanes 128:256 the backward ones.
        (one-hot rows sum to exactly 1, so folding the bias into every row is exact)
      * whh (GLANE, GLANE): rows 0:16 (fwd hidden) / 16:32 (bwd hidden) -> gate lanes.
      * wl  (2*GLANE, K): stacked output projection; rows 0:16 read the fwd hidden from
        the "time t" scratch copy, rows GLANE+16:GLANE+32 read the bwd hidden from the
        "time T-1-t" copy.  All other rows are zero.
    """
    E = params["wih_f"].shape[0]
    K = params["wlin"].shape[1]
    gate_order = (0, 1, 3, 2)     # kernel slots (i, f, o, g) -> PyTorch gate index (i,f,g,o)

    wxf = jnp.zeros((E, GLANE), jnp.float32)
    wxb = jnp.zeros((E, GLANE), jnp.float32)
    whh = jnp.zeros((GLANE, GLANE), jnp.float32)
    bf = jnp.zeros((1, GLANE), jnp.float32)
    bb = jnp.zeros((1, GLANE), jnp.float32)
    for slot, g in enumerate(gate_order):
        src = slice(g * H2, (g + 1) * H2)
        dst_f = slice(slot * GSTRIDE, slot * GSTRIDE + H2)
        dst_b = slice(slot * GSTRIDE + H2, slot * GSTRIDE + 2 * H2)
        wxf = wxf.at[:, dst_f].set(params["wih_f"][:, src])
        wxb = wxb.at[:, dst_b].set(params["wih_b"][:, src])
        whh = whh.at[0:H2, dst_f].set(params["whh_f"][:, src])
        whh = whh.at[H2:2 * H2, dst_b].set(params["whh_b"][:, src])
        bf = bf.at[:, dst_f].set(params["b_f"][:, src])
        bb = bb.at[:, dst_b].set(params["b_b"][:, src])

    emb = params["embedding"]
    wx = jnp.concatenate([emb @ wxf + bf, emb @ wxb + bb], axis=1)          # (V, 2*GLANE)

    wl = jnp.zeros((2 * GLANE, K), jnp.float32)
    wl = wl.at[0:H2, :].set(params["wlin"][0:H2, :])                               # fwd half
    wl = wl.at[GLANE + H2:GLANE + 2 * H2, :].set(params["wlin"][H2:2 * H2, :])     # bwd half
    return wx, whh, wl


@jax.jit
def bilstm_crf_forward(params, sequences, tags, mask, h0, c0):
    # sequences/tags: (B, T) int32;  mask: (B, T) float32;  h0/c0: (2, B, H2).
    B, T = sequences.shape
    assert B <= BP
    wx, whh, wl = pack_params(params)

    def to_time_major(x, dtype):
        xt = jnp.transpose(x, (1, 0)).astype(dtype)                 # (T, B)
        xt = jnp.pad(xt, ((0, 0), (0, BP - B)))                     # pad batch rows -> (T, BP)
        return xt.reshape(T * BP, 1)                                # row = t*BP + b

    ids_tm = to_time_major(sequences, jnp.int32)
    tags_tm = to_time_major(tags, jnp.int32)
    mask_tm = to_time_major(mask, jnp.float32)

    # Initial states: lanes 0:H2 = forward (h0[0]), H2:2*H2 = backward (h0[1]); padded
    # batch rows / padded lanes are exactly zero.
    h0p = (jnp.zeros((BP, GLANE), jnp.float32)
           .at[0:B, 0:H2].set(h0[0]).at[0:B, H2:2 * H2].set(h0[1]))
    c0p = (jnp.zeros((BP, GLANE), jnp.float32)
           .at[0:B, 0:H2].set(c0[0]).at[0:B, H2:2 * H2].set(c0[1]))

    # Grid-less single-program call: total footprint is a few hundred KB and the kernel is
    # bound by the serial T-step chain, so no tiling / pipelining / vmem tuning applies.
    # TODO(synk): for real workloads, batch many sequences and add a "parallel" grid axis
    #             over sequence blocks (also lets v7x use both TensorCores).
    loss = pl.pallas_call(
        bilstm_crf_fused_kernel,
        out_shape=jax.ShapeDtypeStruct((1, 1), jnp.float32),
        in_specs=[_vmem() for _ in range(12)],
        out_specs=pl.BlockSpec(memory_space=pltpu.MemorySpace.SMEM),
        scratch_shapes=[pltpu.VMEM((T * BP, 2 * GLANE), jnp.float32)],
    )(ids_tm, wx, whh, h0p, c0p, wl, params["blin"],
      tags_tm, mask_tm, params["transitions"], params["start"], params["end"])
    return loss[0, 0]


def init_params(key):
    ks = jax.random.split(key, 12)
    u = lambda k, shape: jax.random.uniform(k, shape, jnp.float32, -0.1, 0.1)
    return dict(
        embedding=u(ks[0], (EMBED_SIZE, EMBED_DIM)),
        # LSTM weights stored pre-transposed: (in, 4*H2), (H2, 4*H2), PyTorch gate order
        # i,f,g,o along columns; combined bias b_ih + b_hh.
        wih_f=u(ks[1], (EMBED_DIM, 4 * H2)),
        whh_f=u(ks[2], (H2, 4 * H2)),
        b_f=u(ks[3], (1, 4 * H2)),
        wih_b=u(ks[4], (EMBED_DIM, 4 * H2)),
        whh_b=u(ks[5], (H2, 4 * H2)),
        b_b=u(ks[6], (1, 4 * H2)),
        # Linear: PyTorch (K, HIDDEN) stored transposed as (HIDDEN, K).
        wlin=u(ks[7], (HIDDEN, NUM_TAGS)),
        blin=u(ks[8], (1, NUM_TAGS)),
        # CRF parameters.
        transitions=u(ks[9], (NUM_TAGS, NUM_TAGS)),
        start=u(ks[10], (1, NUM_TAGS)),
        end=u(ks[11], (1, NUM_TAGS)),
    )


if __name__ == "__main__":
    key = jax.random.PRNGKey(0)
    kp, kseq, ktags, kh, kc = jax.random.split(key, 5)

    params = init_params(kp)
    sequences = jax.random.randint(kseq, (BATCH, SEQ), 0, EMBED_SIZE, dtype=jnp.int32)
    tags = jax.random.randint(ktags, (BATCH, SEQ), 0, NUM_TAGS, dtype=jnp.int32)
    lengths = jnp.array([SEQ, SEQ - 2], jnp.int32)
    mask = (jnp.arange(SEQ)[None, :] < lengths[:, None]).astype(jnp.float32)

    # The PyTorch module draws h0/c0 with torch.randn inside get_logits; here they are
    # deterministic draws from the same PRNG key for reproducibility.
    h0 = jax.random.normal(kh, (2, BATCH, H2), jnp.float32)
    c0 = jax.random.normal(kc, (2, BATCH, H2), jnp.float32)

    loss = bilstm_crf_forward(params, sequences, tags, mask, h0, c0)
    jax.block_until_ready(loss)
    print("KERNEL_OK")
</pallas_src>

<mosaic_0001>
module attributes {stable_mosaic.version = 11 : i64} {
  func.func @bilstm_crf_fused_kernel(%arg0: memref<64x1xi32, #tpu.memory_space<vmem>>, %arg1: memref<20x256xf32, #tpu.memory_space<vmem>>, %arg2: memref<128x128xf32, #tpu.memory_space<vmem>>, %arg3: memref<8x128xf32, #tpu.memory_space<vmem>>, %arg4: memref<8x128xf32, #tpu.memory_space<vmem>>, %arg5: memref<256x5xf32, #tpu.memory_space<vmem>>, %arg6: memref<1x5xf32, #tpu.memory_space<vmem>>, %arg7: memref<64x1xi32, #tpu.memory_space<vmem>>, %arg8: memref<64x1xf32, #tpu.memory_space<vmem>>, %arg9: memref<5x5xf32, #tpu.memory_space<vmem>>, %arg10: memref<1x5xf32, #tpu.memory_space<vmem>>, %arg11: memref<1x5xf32, #tpu.memory_space<vmem>>, %arg12: memref<1x1xf32, #tpu.memory_space<smem>>, %arg13: memref<64x256xf32, #tpu.memory_space<vmem>>) attributes {dimension_semantics = [], scalar_prefetch = 0 : i64, scratch_operands = 1 : i64, tpu.core_type = #tpu.core_type<tc>} {
    %c0 = arith.constant 0 : index
    %c0_0 = arith.constant 0 : index
    %0 = vector.load %arg0[%c0, %c0_0] : memref<64x1xi32, #tpu.memory_space<vmem>>, vector<64x1xi32>
    %1 = tpu.iota {dimensions = array<i32: 1>} : vector<64x20xi32>
    %2 = vector.broadcast %0 : vector<64x1xi32> to vector<64x20xi32>
    %3 = arith.cmpi eq, %2, %1 : vector<64x20xi32>
    %4 = arith.extui %3 : vector<64x20xi1> to vector<64x20xi32>
    %5 = arith.sitofp %4 : vector<64x20xi32> to vector<64x20xf32>
    %c0_1 = arith.constant 0 : index
    %c0_2 = arith.constant 0 : index
    %6 = vector.load %arg1[%c0_1, %c0_2] : memref<20x256xf32, #tpu.memory_space<vmem>>, vector<20x256xf32>
    %cst = arith.constant dense<0.000000e+00> : vector<64x256xf32>
    %7 = tpu.matmul %5, %6, %cst {dimension_numbers = #tpu.dot_dimension_numbers<[1], [0], [0], [1], [0, 0, 1, 1], [], []>} : vector<64x20xf32>, vector<20x256xf32>, vector<64x256xf32> -> vector<64x256xf32>
    %c0_3 = arith.constant 0 : index
    %c0_4 = arith.constant 0 : index
    %8 = vector.load %arg2[%c0_3, %c0_4] : memref<128x128xf32, #tpu.memory_space<vmem>>, vector<128x128xf32>
    %c0_5 = arith.constant 0 : index
    %c0_6 = arith.constant 0 : index
    %9 = vector.load %arg3[%c0_5, %c0_6] : memref<8x128xf32, #tpu.memory_space<vmem>>, vector<8x128xf32>
    %c0_7 = arith.constant 0 : index
    %c0_8 = arith.constant 0 : index
    %10 = vector.load %arg4[%c0_7, %c0_8] : memref<8x128xf32, #tpu.memory_space<vmem>>, vector<8x128xf32>
    %11 = vector.extract_strided_slice %7 {offsets = [0, 0], sizes = [8, 128], strides = [1, 1]} : vector<64x256xf32> to vector<8x128xf32>
    %12 = vector.extract_strided_slice %7 {offsets = [56, 128], sizes = [8, 128], strides = [1, 1]} : vector<64x256xf32> to vector<8x128xf32>
    %13 = arith.addf %11, %12 : vector<8x128xf32>
    %cst_9 = arith.constant dense<0.000000e+00> : vector<8x128xf32>
    %14 = tpu.matmul %9, %8, %cst_9 {dimension_numbers = #tpu.dot_dimension_numbers<[1], [0], [0], [1], [0, 0, 1, 1], [], []>} : vector<8x128xf32>, vector<128x128xf32>, vector<8x128xf32> -> vector<8x128xf32>
    %15 = arith.addf %13, %14 : vector<8x128xf32>
    %16 = arith.negf %15 : vector<8x128xf32>
    %17 = math.exp %16 : vector<8x128xf32>
    %cst_10 = arith.constant 1.000000e+00 : f32
    %18 = vector.broadcast %cst_10 : f32 to vector<8x128xf32>
    %19 = arith.addf %18, %17 : vector<8x128xf32>
    %20 = arith.divf %18, %19 : vector<8x128xf32>
    %c32_i32 = arith.constant 32 : i32
    %21 = tpu.dynamic_rotate %15 by %c32_i32 dim 1 : vector<8x128xf32>, i32 -> vector<8x128xf32>
    %22 = math.tanh %21 : vector<8x128xf32>
    %c96_i32 = arith.constant 96 : i32
    %23 = tpu.dynamic_rotate %20 by %c96_i32 dim 1 : vector<8x128xf32>, i32 -> vector<8x128xf32>
    %c64_i32 = arith.constant 64 : i32
    %24 = tpu.dynamic_rotate %20 by %c64_i32 dim 1 : vector<8x128xf32>, i32 -> vector<8x128xf32>
    %25 = arith.mulf %23, %10 : vector<8x128xf32>
    %26 = arith.mulf %20, %22 : vector<8x128xf32>
    %27 = arith.addf %25, %26 : vector<8x128xf32>
    %28 = math.tanh %27 : vector<8x128xf32>
    %29 = arith.mulf %24, %28 : vector<8x128xf32>
    %c0_11 = arith.constant 0 : index
    %c0_12 = arith.constant 0 : index
    %30 = vector.load %arg13[%c0_11, %c0_12] : memref<64x256xf32, #tpu.memory_space<vmem>>, vector<8x128xf32>
    tpu.vector_store %arg13[%c0_11, %c0_12], %29 {strides = array<i32>} : memref<64x256xf32, #tpu.memory_space<vmem>>, vector<8x128xf32>,
    %c56 = arith.constant 56 : index
    %c128 = arith.constant 128 : index
    %31 = vector.load %arg13[%c56, %c128] : memref<64x256xf32, #tpu.memory_space<vmem>>, vector<8x128xf32>
    tpu.vector_store %arg13[%c56, %c128], %29 {strides = array<i32>} : memref<64x256xf32, #tpu.memory_space<vmem>>, vector<8x128xf32>,
    %32 = vector.extract_strided_slice %7 {offsets = [8, 0], sizes = [8, 128], strides = [1, 1]} : vector<64x256xf32> to vector<8x128xf32>
    %33 = vector.extract_strided_slice %7 {offsets = [48, 128], sizes = [8, 128], strides = [1, 1]} : vector<64x256xf32> to vector<8x128xf32>
    %34 = arith.addf %32, %33 : vector<8x128xf32>
    %cst_13 = arith.constant dense<0.000000e+00> : vector<8x128xf32>
    %35 = tpu.matmul %29, %8, %cst_13 {dimension_numbers = #tpu.dot_dimension_numbers<[1], [0], [0], [1], [0, 0, 1, 1], [], []>} : vector<8x128xf32>, vector<128x128xf32>, vector<8x128xf32> -> vector<8x128xf32>
    %36 = arith.addf %34, %35 : vector<8x128xf32>
    %37 = arith.negf %36 : vector<8x128xf32>
    %38 = math.exp %37 : vector<8x128xf32>
    %cst_14 = arith.constant 1.000000e+00 : f32
    %39 = vector.broadcast %cst_14 : f32 to vector<8x128xf32>
    %40 = arith.addf %39, %38 : vector<8x128xf32>
    %41 = arith.divf %39, %40 : vector<8x128xf32>
    %c32_i32_15 = arith.constant 32 : i32
    %42 = tpu.dynamic_rotate %36 by %c32_i32_15 dim 1 : vector<8x128xf32>, i32 -> vector<8x128xf32>
    %43 = math.tanh %42 : vector<8x128xf32>
    %c96_i32_16 = arith.constant 96 : i32
    %44 = tpu.dynamic_rotate %41 by %c96_i32_16 dim 1 : vector<8x128xf32>, i32 -> vector<8x128xf32>
    %c64_i32_17 = arith.constant 64 : i32
    %45 = tpu.dynamic_rotate %41 by %c64_i32_17 dim 1 : vector<8x128xf32>, i32 -> vector<8x128xf32>
    %46 = arith.mulf %44, %27 : vector<8x128xf32>
    %47 = arith.mulf %41, %43 : vector<8x128xf32>
    %48 = arith.addf %46, %47 : vector<8x128xf32>
    %49 = math.tanh %48 : vector<8x128xf32>
    %50 = arith.mulf %45, %49 : vector<8x128xf32>
    %c8 = arith.constant 8 : index
    %c0_18 = arith.constant 0 : index
    %51 = vector.load %arg13[%c8, %c0_18] : memref<64x256xf32, #tpu.memory_space<vmem>>, vector<8x128xf32>
    tpu.vector_store %arg13[%c8, %c0_18], %50 {strides = array<i32>} : memref<64x256xf32, #tpu.memory_space<vmem>>, vector<8x128xf32>,
    %c48 = arith.constant 48 : index
    %c128_19 = arith.constant 128 : index
    %52 = vector.load %arg13[%c48, %c128_19] : memref<64x256xf32, #tpu.memory_space<vmem>>, vector<8x128xf32>
    tpu.vector_store %arg13[%c48, %c128_19], %50 {strides = array<i32>} : memref<64x256xf32, #tpu.memory_space<vmem>>, vector<8x128xf32>,
    %53 = vector.extract_strided_slice %7 {offsets = [16, 0], sizes = [8, 128], strides = [1, 1]} : vector<64x256xf32> to vector<8x128xf32>
    %54 = vector.extract_strided_slice %7 {offsets = [40, 128], sizes = [8, 128], strides = [1, 1]} : vector<64x256xf32> to vector<8x128xf32>
    %55 = arith.addf %53, %54 : vector<8x128xf32>
    %cst_20 = arith.constant dense<0.000000e+00> : vector<8x128xf32>
    %56 = tpu.matmul %50, %8, %cst_20 {dimension_numbers = #tpu.dot_dimension_numbers<[1], [0], [0], [1], [0, 0, 1, 1], [], []>} : vector<8x128xf32>, vector<128x128xf32>, vector<8x128xf32> -> vector<8x128xf32>
    %57 = arith.addf %55, %56 : vector<8x128xf32>
    %58 = arith.negf %57 : vector<8x128xf32>
    %59 = math.exp %58 : vector<8x128xf32>
    %cst_21 = arith.constant 1.000000e+00 : f32
    %60 = vector.broadcast %cst_21 : f32 to vector<8x128xf32>
    %61 = arith.addf %60, %59 : vector<8x128xf32>
    %62 = arith.divf %60, %61 : vector<8x128xf32>
    %c32_i32_22 = arith.constant 32 : i32
    %63 = tpu.dynamic_rotate %57 by %c32_i32_22 dim 1 : vector<8x128xf32>, i32 -> vector<8x128xf32>
    %64 = math.tanh %63 : vector<8x128xf32>
    %c96_i32_23 = arith.constant 96 : i32
    %65 = tpu.dynamic_rotate %62 by %c96_i32_23 dim 1 : vector<8x128xf32>, i32 -> vector<8x128xf32>
    %c64_i32_24 = arith.constant 64 : i32
    %66 = tpu.dynamic_rotate %62 by %c64_i32_24 dim 1 : vector<8x128xf32>, i32 -> vector<8x128xf32>
    %67 = arith.mulf %65, %48 : vector<8x128xf32>
    %68 = arith.mulf %62, %64 : vector<8x128xf32>
    %69 = arith.addf %67, %68 : vector<8x128xf32>
    %70 = math.tanh %69 : vector<8x128xf32>
    %71 = arith.mulf %66, %70 : vector<8x128xf32>
    %c16 = arith.constant 16 : index
    %c0_25 = arith.constant 0 : index
    %72 = vector.load %arg13[%c16, %c0_25] : memref<64x256xf32, #tpu.memory_space<vmem>>, vector<8x128xf32>
    tpu.vector_store %arg13[%c16, %c0_25], %71 {strides = array<i32>} : memref<64x256xf32, #tpu.memory_space<vmem>>, vector<8x128xf32>,
    %c40 = arith.constant 40 : index
    %c128_26 = arith.constant 128 : index
    %73 = vector.load %arg13[%c40, %c128_26] : memref<64x256xf32, #tpu.memory_space<vmem>>, vector<8x128xf32>
    tpu.vector_store %arg13[%c40, %c128_26], %71 {strides = array<i32>} : memref<64x256xf32, #tpu.memory_space<vmem>>, vector<8x128xf32>,
    %74 = vector.extract_strided_slice %7 {offsets = [24, 0], sizes = [8, 128], strides = [1, 1]} : vector<64x256xf32> to vector<8x128xf32>
    %75 = vector.extract_strided_slice %7 {offsets = [32, 128], sizes = [8, 128], strides = [1, 1]} : vector<64x256xf32> to vector<8x128xf32>
    %76 = arith.addf %74, %75 : vector<8x128xf32>
    %cst_27 = arith.constant dense<0.000000e+00> : vector<8x128xf32>
    %77 = tpu.matmul %71, %8, %cst_27 {dimension_numbers = #tpu.dot_dimension_numbers<[1], [0], [0], [1], [0, 0, 1, 1], [], []>} : vector<8x128xf32>, vector<128x128xf32>, vector<8x128xf32> -> vector<8x128xf32>
    %78 = arith.addf %76, %77 : vector<8x128xf32>
    %79 = arith.negf %78 : vector<8x128xf32>
    %80 = math.exp %79 : vector<8x128xf32>
    %cst_28 = arith.constant 1.000000e+00 : f32
    %81 = vector.broadcast %cst_28 : f32 to vector<8x128xf32>
    %82 = arith.addf %81, %80 : vector<8x128xf32>
    %83 = arith.divf %81, %82 : vector<8x128xf32>
    %c32_i32_29 = arith.constant 32 : i32
    %84 = tpu.dynamic_rotate %78 by %c32_i32_29 dim 1 : vector<8x128xf32>, i32 -> vector<8x128xf32>
    %85 = math.tanh %84 : vector<8x128xf32>
    %c96_i32_30 = arith.constant 96 : i32
    %86 = tpu.dynamic_rotate %83 by %c96_i32_30 dim 1 : vector<8x128xf32>, i32 -> vector<8x128xf32>
    %c64_i32_31 = arith.constant 64 : i32
    %87 = tpu.dynamic_rotate %83 by %c64_i32_31 dim 1 : vector<8x128xf32>, i32 -> vector<8x128xf32>
    %88 = arith.mulf %86, %69 : vector<8x128xf32>
    %89 = arith.mulf %83, %85 : vector<8x128xf32>
    %90 = arith.addf %88, %89 : vector<8x128xf32>
    %91 = math.tanh %90 : vector<8x128xf32>
    %92 = arith.mulf %87, %91 : vector<8x128xf32>
    %c24 = arith.constant 24 : index
    %c0_32 = arith.constant 0 : index
    %93 = vector.load %arg13[%c24, %c0_32] : memref<64x256xf32, #tpu.memory_space<vmem>>, vector<8x128xf32>
    tpu.vector_store %arg13[%c24, %c0_32], %92 {strides = array<i32>} : memref<64x256xf32, #tpu.memory_space<vmem>>, vector<8x128xf32>,
    %c32 = arith.constant 32 : index
    %c128_33 = arith.constant 128 : index
    %94 = vector.load %arg13[%c32, %c128_33] : memref<64x256xf32, #tpu.memory_space<vmem>>, vector<8x128xf32>
    tpu.vector_store %arg13[%c32, %c128_33], %92 {strides = array<i32>} : memref<64x256xf32, #tpu.memory_space<vmem>>, vector<8x128xf32>,
    %95 = vector.extract_strided_slice %7 {offsets = [32, 0], sizes = [8, 128], strides = [1, 1]} : vector<64x256xf32> to vector<8x128xf32>
    %96 = vector.extract_strided_slice %7 {offsets = [24, 128], sizes = [8, 128], strides = [1, 1]} : vector<64x256xf32> to vector<8x128xf32>
    %97 = arith.addf %95, %96 : vector<8x128xf32>
    %cst_34 = arith.constant dense<0.000000e+00> : vector<8x128xf32>
    %98 = tpu.matmul %92, %8, %cst_34 {dimension_numbers = #tpu.dot_dimension_numbers<[1], [0], [0], [1], [0, 0, 1, 1], [], []>} : vector<8x128xf32>, vector<128x128xf32>, vector<8x128xf32> -> vector<8x128xf32>
    %99 = arith.addf %97, %98 : vector<8x128xf32>
    %100 = arith.negf %99 : vector<8x128xf32>
    %101 = math.exp %100 : vector<8x128xf32>
    %cst_35 = arith.constant 1.000000e+00 : f32
    %102 = vector.broadcast %cst_35 : f32 to vector<8x128xf32>
    %103 = arith.addf %102, %101 : vector<8x128xf32>
    %104 = arith.divf %102, %103 : vector<8x128xf32>
    %c32_i32_36 = arith.constant 32 : i32
    %105 = tpu.dynamic_rotate %99 by %c32_i32_36 dim 1 : vector<8x128xf32>, i32 -> vector<8x128xf32>
    %106 = math.tanh %105 : vector<8x128xf32>
    %c96_i32_37 = arith.constant 96 : i32
    %107 = tpu.dynamic_rotate %104 by %c96_i32_37 dim 1 : vector<8x128xf32>, i32 -> vector<8x128xf32>
    %c64_i32_38 = arith.constant 64 : i32
    %108 = tpu.dynamic_rotate %104 by %c64_i32_38 dim 1 : vector<8x128xf32>, i32 -> vector<8x128xf32>
    %109 = arith.mulf %107, %90 : vector<8x128xf32>
    %110 = arith.mulf %104, %106 : vector<8x128xf32>
    %111 = arith.addf %109, %110 : vector<8x128xf32>
    %112 = math.tanh %111 : vector<8x128xf32>
    %113 = arith.mulf %108, %112 : vector<8x128xf32>
    %c32_39 = arith.constant 32 : index
    %c0_40 = arith.constant 0 : index
    %114 = vector.load %arg13[%c32_39, %c0_40] : memref<64x256xf32, #tpu.memory_space<vmem>>, vector<8x128xf32>
    tpu.vector_store %arg13[%c32_39, %c0_40], %113 {strides = array<i32>} : memref<64x256xf32, #tpu.memory_space<vmem>>, vector<8x128xf32>,
    %c24_41 = arith.constant 24 : index
    %c128_42 = arith.constant 128 : index
    %115 = vector.load %arg13[%c24_41, %c128_42] : memref<64x256xf32, #tpu.memory_space<vmem>>, vector<8x128xf32>
    tpu.vector_store %arg13[%c24_41, %c128_42], %113 {strides = array<i32>} : memref<64x256xf32, #tpu.memory_space<vmem>>, vector<8x128xf32>,
    %116 = vector.extract_strided_slice %7 {offsets = [40, 0], sizes = [8, 128], strides = [1, 1]} : vector<64x256xf32> to vector<8x128xf32>
    %117 = vector.extract_strided_slice %7 {offsets = [16, 128], sizes = [8, 128], strides = [1, 1]} : vector<64x256xf32> to vector<8x128xf32>
    %118 = arith.addf %116, %117 : vector<8x128xf32>
    %cst_43 = arith.constant dense<0.000000e+00> : vector<8x128xf32>
    %119 = tpu.matmul %113, %8, %cst_43 {dimension_numbers = #tpu.dot_dimension_numbers<[1], [0], [0], [1], [0, 0, 1, 1], [], []>} : vector<8x128xf32>, vector<128x128xf32>, vector<8x128xf32> -> vector<8x128xf32>
    %120 = arith.addf %118, %119 : vector<8x128xf32>
    %121 = arith.negf %120 : vector<8x128xf32>
    %122 = math.exp %121 : vector<8x128xf32>
    %cst_44 = arith.constant 1.000000e+00 : f32
    %123 = vector.broadcast %cst_44 : f32 to vector<8x128xf32>
    %124 = arith.addf %123, %122 : vector<8x128xf32>
    %125 = arith.divf %123, %124 : vector<8x128xf32>
    %c32_i32_45 = arith.constant 32 : i32
    %126 = tpu.dynamic_rotate %120 by %c32_i32_45 dim 1 : vector<8x128xf32>, i32 -> vector<8x128xf32>
    %127 = math.tanh %126 : vector<8x128xf32>
    %c96_i32_46 = arith.constant 96 : i32
    %128 = tpu.dynamic_rotate %125 by %c96_i32_46 dim 1 : vector<8x128xf32>, i32 -> vector<8x128xf32>
    %c64_i32_47 = arith.constant 64 : i32
    %129 = tpu.dynamic_rotate %125 by %c64_i32_47 dim 1 : vector<8x128xf32>, i32 -> vector<8x128xf32>
    %130 = arith.mulf %128, %111 : vector<8x128xf32>
    %131 = arith.mulf %125, %127 : vector<8x128xf32>
    %132 = arith.addf %130, %131 : vector<8x128xf32>
    %133 = math.tanh %132 : vector<8x128xf32>
    %134 = arith.mulf %129, %133 : vector<8x128xf32>
    %c40_48 = arith.constant 40 : index
    %c0_49 = arith.constant 0 : index
    %135 = vector.load %arg13[%c40_48, %c0_49] : memref<64x256xf32, #tpu.memory_space<vmem>>, vector<8x128xf32>
    tpu.vector_store %arg13[%c40_48, %c0_49], %134 {strides = array<i32>} : memref<64x256xf32, #tpu.memory_space<vmem>>, vector<8x128xf32>,
    %c16_50 = arith.constant 16 : index
    %c128_51 = arith.constant 128 : index
    %136 = vector.load %arg13[%c16_50, %c128_51] : memref<64x256xf32, #tpu.memory_space<vmem>>, vector<8x128xf32>
    tpu.vector_store %arg13[%c16_50, %c128_51], %134 {strides = array<i32>} : memref<64x256xf32, #tpu.memory_space<vmem>>, vector<8x128xf32>,
    %137 = vector.extract_strided_slice %7 {offsets = [48, 0], sizes = [8, 128], strides = [1, 1]} : vector<64x256xf32> to vector<8x128xf32>
    %138 = vector.extract_strided_slice %7 {offsets = [8, 128], sizes = [8, 128], strides = [1, 1]} : vector<64x256xf32> to vector<8x128xf32>
    %139 = arith.addf %137, %138 : vector<8x128xf32>
    %cst_52 = arith.constant dense<0.000000e+00> : vector<8x128xf32>
    %140 = tpu.matmul %134, %8, %cst_52 {dimension_numbers = #tpu.dot_dimension_numbers<[1], [0], [0], [1], [0, 0, 1, 1], [], []>} : vector<8x128xf32>, vector<128x128xf32>, vector<8x128xf32> -> vector<8x128xf32>
    %141 = arith.addf %139, %140 : vector<8x128xf32>
    %142 = arith.negf %141 : vector<8x128xf32>
    %143 = math.exp %142 : vector<8x128xf32>
    %cst_53 = arith.constant 1.000000e+00 : f32
    %144 = vector.broadcast %cst_53 : f32 to vector<8x128xf32>
    %145 = arith.addf %144, %143 : vector<8x128xf32>
    %146 = arith.divf %144, %145 : vector<8x128xf32>
    %c32_i32_54 = arith.constant 32 : i32
    %147 = tpu.dynamic_rotate %141 by %c32_i32_54 dim 1 : vector<8x128xf32>, i32 -> vector<8x128xf32>
    %148 = math.tanh %147 : vector<8x128xf32>
    %c96_i32_55 = arith.constant 96 : i32
    %149 = tpu.dynamic_rotate %146 by %c96_i32_55 dim 1 : vector<8x128xf32>, i32 -> vector<8x128xf32>
    %c64_i32_56 = arith.constant 64 : i32
    %150 = tpu.dynamic_rotate %146 by %c64_i32_56 dim 1 : vector<8x128xf32>, i32 -> vector<8x128xf32>
    %151 = arith.mulf %149, %132 : vector<8x128xf32>
    %152 = arith.mulf %146, %148 : vector<8x128xf32>
    %153 = arith.addf %151, %152 : vector<8x128xf32>
    %154 = math.tanh %153 : vector<8x128xf32>
    %155 = arith.mulf %150, %154 : vector<8x128xf32>
    %c48_57 = arith.constant 48 : index
    %c0_58 = arith.constant 0 : index
    %156 = vector.load %arg13[%c48_57, %c0_58] : memref<64x256xf32, #tpu.memory_space<vmem>>, vector<8x128xf32>
    tpu.vector_store %arg13[%c48_57, %c0_58], %155 {strides = array<i32>} : memref<64x256xf32, #tpu.memory_space<vmem>>, vector<8x128xf32>,
    %c8_59 = arith.constant 8 : index
    %c128_60 = arith.constant 128 : index
    %157 = vector.load %arg13[%c8_59, %c128_60] : memref<64x256xf32, #tpu.memory_space<vmem>>, vector<8x128xf32>
    tpu.vector_store %arg13[%c8_59, %c128_60], %155 {strides = array<i32>} : memref<64x256xf32, #tpu.memory_space<vmem>>, vector<8x128xf32>,
    %158 = vector.extract_strided_slice %7 {offsets = [56, 0], sizes = [8, 128], strides = [1, 1]} : vector<64x256xf32> to vector<8x128xf32>
    %159 = vector.extract_strided_slice %7 {offsets = [0, 128], sizes = [8, 128], strides = [1, 1]} : vector<64x256xf32> to vector<8x128xf32>
    %160 = arith.addf %158, %159 : vector<8x128xf32>
    %cst_61 = arith.constant dense<0.000000e+00> : vector<8x128xf32>
    %161 = tpu.matmul %155, %8, %cst_61 {dimension_numbers = #tpu.dot_dimension_numbers<[1], [0], [0], [1], [0, 0, 1, 1], [], []>} : vector<8x128xf32>, vector<128x128xf32>, vector<8x128xf32> -> vector<8x128xf32>
    %162 = arith.addf %160, %161 : vector<8x128xf32>
    %163 = arith.negf %162 : vector<8x128xf32>
    %164 = math.exp %163 : vector<8x128xf32>
    %cst_62 = arith.constant 1.000000e+00 : f32
    %165 = vector.broadcast %cst_62 : f32 to vector<8x128xf32>
    %166 = arith.addf %165, %164 : vector<8x128xf32>
    %167 = arith.divf %165, %166 : vector<8x128xf32>
    %c32_i32_63 = arith.constant 32 : i32
    %168 = tpu.dynamic_rotate %162 by %c32_i32_63 dim 1 : vector<8x128xf32>, i32 -> vector<8x128xf32>
    %169 = math.tanh %168 : vector<8x128xf32>
    %c96_i32_64 = arith.constant 96 : i32
    %170 = tpu.dynamic_rotate %167 by %c96_i32_64 dim 1 : vector<8x128xf32>, i32 -> vector<8x128xf32>
    %c64_i32_65 = arith.constant 64 : i32
    %171 = tpu.dynamic_rotate %167 by %c64_i32_65 dim 1 : vector<8x128xf32>, i32 -> vector<8x128xf32>
    %172 = arith.mulf %170, %153 : vector<8x128xf32>
    %173 = arith.mulf %167, %169 : vector<8x128xf32>
    %174 = arith.addf %172, %173 : vector<8x128xf32>
    %175 = math.tanh %174 : vector<8x128xf32>
    %176 = arith.mulf %171, %175 : vector<8x128xf32>
    %c56_66 = arith.constant 56 : index
    %c0_67 = arith.constant 0 : index
    %177 = vector.load %arg13[%c56_66, %c0_67] : memref<64x256xf32, #tpu.memory_space<vmem>>, vector<8x128xf32>
    tpu.vector_store %arg13[%c56_66, %c0_67], %176 {strides = array<i32>} : memref<64x256xf32, #tpu.memory_space<vmem>>, vector<8x128xf32>,
    %c0_68 = arith.constant 0 : index
    %c128_69 = arith.constant 128 : index
    %178 = vector.load %arg13[%c0_68, %c128_69] : memref<64x256xf32, #tpu.memory_space<vmem>>, vector<8x128xf32>
    tpu.vector_store %arg13[%c0_68, %c128_69], %176 {strides = array<i32>} : memref<64x256xf32, #tpu.memory_space<vmem>>, vector<8x128xf32>,
    %c0_70 = arith.constant 0 : index
    %c0_71 = arith.constant 0 : index
    %179 = vector.load %arg13[%c0_70, %c0_71] : memref<64x256xf32, #tpu.memory_space<vmem>>, vector<64x256xf32>
    %c0_72 = arith.constant 0 : index
    %c0_73 = arith.constant 0 : index
    %180 = vector.load %arg5[%c0_72, %c0_73] : memref<256x5xf32, #tpu.memory_space<vmem>>, vector<256x5xf32>
    %cst_74 = arith.constant dense<0.000000e+00> : vector<64x5xf32>
    %181 = tpu.matmul %179, %180, %cst_74 {dimension_numbers = #tpu.dot_dimension_numbers<[1], [0], [0], [1], [0, 0, 1, 1], [], []>} : vector<64x256xf32>, vector<256x5xf32>, vector<64x5xf32> -> vector<64x5xf32>
    %c0_75 = arith.constant 0 : index
    %c0_76 = arith.constant 0 : index
    %182 = vector.load %arg6[%c0_75, %c0_76] : memref<1x5xf32, #tpu.memory_space<vmem>>, vector<1x5xf32>
    %183 = vector.broadcast %182 : vector<1x5xf32> to vector<64x5xf32>
    %184 = arith.addf %181, %183 : vector<64x5xf32>
    %c0_77 = arith.constant 0 : index
    %c0_78 = arith.constant 0 : index
    %185 = vector.load %arg9[%c0_77, %c0_78] : memref<5x5xf32, #tpu.memory_space<vmem>>, vector<5x5xf32>
    %c0_79 = arith.constant 0 : index
    %c0_80 = arith.constant 0 : index
    %186 = vector.load %arg10[%c0_79, %c0_80] : memref<1x5xf32, #tpu.memory_space<vmem>>, vector<1x5xf32>
    %c0_81 = arith.constant 0 : index
    %c0_82 = arith.constant 0 : index
    %187 = vector.load %arg11[%c0_81, %c0_82] : memref<1x5xf32, #tpu.memory_space<vmem>>, vector<1x5xf32>
    %c0_83 = arith.constant 0 : index
    %c0_84 = arith.constant 0 : index
    %188 = vector.load %arg8[%c0_83, %c0_84] : memref<64x1xf32, #tpu.memory_space<vmem>>, vector<64x1xf32>
    %c0_85 = arith.constant 0 : index
    %c0_86 = arith.constant 0 : index
    %189 = vector.load %arg7[%c0_85, %c0_86] : memref<64x1xi32, #tpu.memory_space<vmem>>, vector<64x1xi32>
    %190 = tpu.iota {dimensions = array<i32: 1>} : vector<64x5xi32>
    %191 = vector.broadcast %189 : vector<64x1xi32> to vector<64x5xi32>
    %192 = arith.cmpi eq, %191, %190 : vector<64x5xi32>
    %193 = arith.extui %192 : vector<64x5xi1> to vector<64x5xi32>
    %194 = arith.sitofp %193 : vector<64x5xi32> to vector<64x5xf32>
    %195 = arith.mulf %184, %194 : vector<64x5xf32>
    %196 = vector.broadcast %188 : vector<64x1xf32> to vector<64x5xf32>
    %197 = arith.mulf %195, %196 : vector<64x5xf32>
    %198 = vector.shape_cast %197 : vector<64x5xf32> to vector<8x8x5xf32>
    %cst_87 = arith.constant dense<0.000000e+00> : vector<8x5xf32>
    %199 = vector.multi_reduction <add>, %198, %cst_87 [0] : vector<8x8x5xf32> to vector<8x5xf32>
    %cst_88 = arith.constant dense<0.000000e+00> : vector<8xf32>
    %200 = vector.multi_reduction <add>, %199, %cst_88 [1] : vector<8x5xf32> to vector<8xf32>
    %201 = vector.shape_cast %200 : vector<8xf32> to vector<8x1xf32>
    %202 = vector.extract_strided_slice %194 {offsets = [0, 0], sizes = [56, 5], strides = [1, 1]} : vector<64x5xf32> to vector<56x5xf32>
    %203 = vector.extract_strided_slice %194 {offsets = [8, 0], sizes = [56, 5], strides = [1, 1]} : vector<64x5xf32> to vector<56x5xf32>
    %cst_89 = arith.constant dense<0.000000e+00> : vector<56x5xf32>
    %204 = tpu.matmul %202, %185, %cst_89 {dimension_numbers = #tpu.dot_dimension_numbers<[1], [0], [0], [1], [0, 0, 1, 1], [], []>} : vector<56x5xf32>, vector<5x5xf32>, vector<56x5xf32> -> vector<56x5xf32>
    %205 = arith.mulf %204, %203 : vector<56x5xf32>
    %206 = vector.extract_strided_slice %188 {offsets = [8, 0], sizes = [56, 1], strides = [1, 1]} : vector<64x1xf32> to vector<56x1xf32>
    %207 = vector.broadcast %206 : vector<56x1xf32> to vector<56x5xf32>
    %208 = arith.mulf %205, %207 : vector<56x5xf32>
    %209 = vector.shape_cast %208 : vector<56x5xf32> to vector<7x8x5xf32>
    %cst_90 = arith.constant dense<0.000000e+00> : vector<8x5xf32>
    %210 = vector.multi_reduction <add>, %209, %cst_90 [0] : vector<7x8x5xf32> to vector<8x5xf32>
    %cst_91 = arith.constant dense<0.000000e+00> : vector<8xf32>
    %211 = vector.multi_reduction <add>, %210, %cst_91 [1] : vector<8x5xf32> to vector<8xf32>
    %212 = vector.shape_cast %211 : vector<8xf32> to vector<8x1xf32>
    %213 = vector.extract_strided_slice %188 {offsets = [8, 0], sizes = [56, 1], strides = [1, 1]} : vector<64x1xf32> to vector<56x1xf32>
    %cst_92 = arith.constant 0.000000e+00 : f32
    %214 = vector.broadcast %cst_92 : f32 to vector<8x1xf32>
    %215 = tpu.concatenate %213, %214 in 0 : vector<56x1xf32>, vector<8x1xf32> -> vector<64x1xf32>
    %cst_93 = arith.constant 1.000000e+00 : f32
    %216 = vector.broadcast %cst_93 : f32 to vector<64x1xf32>
    %217 = arith.subf %216, %215 : vector<64x1xf32>
    %218 = arith.mulf %188, %217 : vector<64x1xf32>
    %219 = vector.broadcast %218 : vector<64x1xf32> to vector<64x5xf32>
    %220 = arith.mulf %194, %219 : vector<64x5xf32>
    %221 = vector.shape_cast %220 : vector<64x5xf32> to vector<8x8x5xf32>
    %cst_94 = arith.constant dense<0.000000e+00> : vector<8x5xf32>
    %222 = vector.multi_reduction <add>, %221, %cst_94 [0] : vector<8x8x5xf32> to vector<8x5xf32>
    %223 = vector.extract_strided_slice %194 {offsets = [0, 0], sizes = [8, 5], strides = [1, 1]} : vector<64x5xf32> to vector<8x5xf32>
    %224 = vector.broadcast %186 : vector<1x5xf32> to vector<8x5xf32>
    %225 = arith.mulf %224, %223 : vector<8x5xf32>
    %cst_95 = arith.constant dense<0.000000e+00> : vector<8xf32>
    %226 = vector.multi_reduction <add>, %225, %cst_95 [1] : vector<8x5xf32> to vector<8xf32>
    %227 = vector.shape_cast %226 : vector<8xf32> to vector<8x1xf32>
    %228 = vector.broadcast %187 : vector<1x5xf32> to vector<8x5xf32>
    %229 = arith.mulf %228, %222 : vector<8x5xf32>
    %cst_96 = arith.constant dense<0.000000e+00> : vector<8xf32>
    %230 = vector.multi_reduction <add>, %229, %cst_96 [1] : vector<8x5xf32> to vector<8xf32>
    %231 = vector.shape_cast %230 : vector<8xf32> to vector<8x1xf32>
    %232 = arith.addf %227, %201 : vector<8x1xf32>
    %233 = arith.addf %232, %212 : vector<8x1xf32>
    %234 = arith.addf %233, %231 : vector<8x1xf32>
    %235 = math.exp %185 : vector<5x5xf32>
    %236 = vector.extract_strided_slice %184 {offsets = [0, 0], sizes = [8, 5], strides = [1, 1]} : vector<64x5xf32> to vector<8x5xf32>
    %237 = vector.broadcast %186 : vector<1x5xf32> to vector<8x5xf32>
    %238 = arith.addf %237, %236 : vector<8x5xf32>
    %239 = vector.extract_strided_slice %184 {offsets = [8, 0], sizes = [8, 5], strides = [1, 1]} : vector<64x5xf32> to vector<8x5xf32>
    %cst_97 = arith.constant dense<0xFF800000> : vector<8xf32>
    %240 = vector.multi_reduction <maximumf>, %238, %cst_97 [1] : vector<8x5xf32> to vector<8xf32>
    %241 = vector.shape_cast %240 : vector<8xf32> to vector<8x1xf32>
    %242 = vector.broadcast %241 : vector<8x1xf32> to vector<8x5xf32>
    %243 = arith.subf %238, %242 : vector<8x5xf32>
    %244 = math.exp %243 : vector<8x5xf32>
    %cst_98 = arith.constant dense<0.000000e+00> : vector<8x5xf32>
    %245 = tpu.matmul %244, %235, %cst_98 {dimension_numbers = #tpu.dot_dimension_numbers<[1], [0], [0], [1], [0, 0, 1, 1], [], []>} : vector<8x5xf32>, vector<5x5xf32>, vector<8x5xf32> -> vector<8x5xf32>
    %246 = vector.broadcast %241 : vector<8x1xf32> to vector<8x5xf32>
    %247 = arith.addf %239, %246 : vector<8x5xf32>
    %248 = math.log %245 : vector<8x5xf32>
    %249 = arith.addf %247, %248 : vector<8x5xf32>
    %250 = vector.extract_strided_slice %188 {offsets = [8, 0], sizes = [8, 1], strides = [1, 1]} : vector<64x1xf32> to vector<8x1xf32>
    %251 = vector.broadcast %250 : vector<8x1xf32> to vector<8x5xf32>
    %252 = arith.mulf %249, %251 : vector<8x5xf32>
    %cst_99 = arith.constant 1.000000e+00 : f32
    %253 = vector.broadcast %cst_99 : f32 to vector<8x1xf32>
    %254 = arith.subf %253, %250 : vector<8x1xf32>
    %255 = vector.broadcast %254 : vector<8x1xf32> to vector<8x5xf32>
    %256 = arith.mulf %238, %255 : vector<8x5xf32>
    %257 = arith.addf %252, %256 : vector<8x5xf32>
    %258 = vector.extract_strided_slice %184 {offsets = [16, 0], sizes = [8, 5], strides = [1, 1]} : vector<64x5xf32> to vector<8x5xf32>
    %cst_100 = arith.constant dense<0xFF800000> : vector<8xf32>
    %259 = vector.multi_reduction <maximumf>, %257, %cst_100 [1] : vector<8x5xf32> to vector<8xf32>
    %260 = vector.shape_cast %259 : vector<8xf32> to vector<8x1xf32>
    %261 = vector.broadcast %260 : vector<8x1xf32> to vector<8x5xf32>
    %262 = arith.subf %257, %261 : vector<8x5xf32>
    %263 = math.exp %262 : vector<8x5xf32>
    %cst_101 = arith.constant dense<0.000000e+00> : vector<8x5xf32>
    %264 = tpu.matmul %263, %235, %cst_101 {dimension_numbers = #tpu.dot_dimension_numbers<[1], [0], [0], [1], [0, 0, 1, 1], [], []>} : vector<8x5xf32>, vector<5x5xf32>, vector<8x5xf32> -> vector<8x5xf32>
    %265 = vector.broadcast %260 : vector<8x1xf32> to vector<8x5xf32>
    %266 = arith.addf %258, %265 : vector<8x5xf32>
    %267 = math.log %264 : vector<8x5xf32>
    %268 = arith.addf %266, %267 : vector<8x5xf32>
    %269 = vector.extract_strided_slice %188 {offsets = [16, 0], sizes = [8, 1], strides = [1, 1]} : vector<64x1xf32> to vector<8x1xf32>
    %270 = vector.broadcast %269 : vector<8x1xf32> to vector<8x5xf32>
    %271 = arith.mulf %268, %270 : vector<8x5xf32>
    %cst_102 = arith.constant 1.000000e+00 : f32
    %272 = vector.broadcast %cst_102 : f32 to vector<8x1xf32>
    %273 = arith.subf %272, %269 : vector<8x1xf32>
    %274 = vector.broadcast %273 : vector<8x1xf32> to vector<8x5xf32>
    %275 = arith.mulf %257, %274 : vector<8x5xf32>
    %276 = arith.addf %271, %275 : vector<8x5xf32>
    %277 = vector.extract_strided_slice %184 {offsets = [24, 0], sizes = [8, 5], strides = [1, 1]} : vector<64x5xf32> to vector<8x5xf32>
    %cst_103 = arith.constant dense<0xFF800000> : vector<8xf32>
    %278 = vector.multi_reduction <maximumf>, %276, %cst_103 [1] : vector<8x5xf32> to vector<8xf32>
    %279 = vector.shape_cast %278 : vector<8xf32> to vector<8x1xf32>
    %280 = vector.broadcast %279 : vector<8x1xf32> to vector<8x5xf32>
    %281 = arith.subf %276, %280 : vector<8x5xf32>
    %282 = math.exp %281 : vector<8x5xf32>
    %cst_104 = arith.constant dense<0.000000e+00> : vector<8x5xf32>
    %283 = tpu.matmul %282, %235, %cst_104 {dimension_numbers = #tpu.dot_dimension_numbers<[1], [0], [0], [1], [0, 0, 1, 1], [], []>} : vector<8x5xf32>, vector<5x5xf32>, vector<8x5xf32> -> vector<8x5xf32>
    %284 = vector.broadcast %279 : vector<8x1xf32> to vector<8x5xf32>
    %285 = arith.addf %277, %284 : vector<8x5xf32>
    %286 = math.log %283 : vector<8x5xf32>
    %287 = arith.addf %285, %286 : vector<8x5xf32>
    %288 = vector.extract_strided_slice %188 {offsets = [24, 0], sizes = [8, 1], strides = [1, 1]} : vector<64x1xf32> to vector<8x1xf32>
    %289 = vector.broadcast %288 : vector<8x1xf32> to vector<8x5xf32>
    %290 = arith.mulf %287, %289 : vector<8x5xf32>
    %cst_105 = arith.constant 1.000000e+00 : f32
    %291 = vector.broadcast %cst_105 : f32 to vector<8x1xf32>
    %292 = arith.subf %291, %288 : vector<8x1xf32>
    %293 = vector.broadcast %292 : vector<8x1xf32> to vector<8x5xf32>
    %294 = arith.mulf %276, %293 : vector<8x5xf32>
    %295 = arith.addf %290, %294 : vector<8x5xf32>
    %296 = vector.extract_strided_slice %184 {offsets = [32, 0], sizes = [8, 5], strides = [1, 1]} : vector<64x5xf32> to vector<8x5xf32>
    %cst_106 = arith.constant dense<0xFF800000> : vector<8xf32>
    %297 = vector.multi_reduction <maximumf>, %295, %cst_106 [1] : vector<8x5xf32> to vector<8xf32>
    %298 = vector.shape_cast %297 : vector<8xf32> to vector<8x1xf32>
    %299 = vector.broadcast %298 : vector<8x1xf32> to vector<8x5xf32>
    %300 = arith.subf %295, %299 : vector<8x5xf32>
    %301 = math.exp %300 : vector<8x5xf32>
    %cst_107 = arith.constant dense<0.000000e+00> : vector<8x5xf32>
    %302 = tpu.matmul %301, %235, %cst_107 {dimension_numbers = #tpu.dot_dimension_numbers<[1], [0], [0], [1], [0, 0, 1, 1], [], []>} : vector<8x5xf32>, vector<5x5xf32>, vector<8x5xf32> -> vector<8x5xf32>
    %303 = vector.broadcast %298 : vector<8x1xf32> to vector<8x5xf32>
    %304 = arith.addf %296, %303 : vector<8x5xf32>
    %305 = math.log %302 : vector<8x5xf32>
    %306 = arith.addf %304, %305 : vector<8x5xf32>
    %307 = vector.extract_strided_slice %188 {offsets = [32, 0], sizes = [8, 1], strides = [1, 1]} : vector<64x1xf32> to vector<8x1xf32>
    %308 = vector.broadcast %307 : vector<8x1xf32> to vector<8x5xf32>
    %309 = arith.mulf %306, %308 : vector<8x5xf32>
    %cst_108 = arith.constant 1.000000e+00 : f32
    %310 = vector.broadcast %cst_108 : f32 to vector<8x1xf32>
    %311 = arith.subf %310, %307 : vector<8x1xf32>
    %312 = vector.broadcast %311 : vector<8x1xf32> to vector<8x5xf32>
    %313 = arith.mulf %295, %312 : vector<8x5xf32>
    %314 = arith.addf %309, %313 : vector<8x5xf32>
    %315 = vector.extract_strided_slice %184 {offsets = [40, 0], sizes = [8, 5], strides = [1, 1]} : vector<64x5xf32> to vector<8x5xf32>
    %cst_109 = arith.constant dense<0xFF800000> : vector<8xf32>
    %316 = vector.multi_reduction <maximumf>, %314, %cst_109 [1] : vector<8x5xf32> to vector<8xf32>
    %317 = vector.shape_cast %316 : vector<8xf32> to vector<8x1xf32>
    %318 = vector.broadcast %317 : vector<8x1xf32> to vector<8x5xf32>
    %319 = arith.subf %314, %318 : vector<8x5xf32>
    %320 = math.exp %319 : vector<8x5xf32>
    %cst_110 = arith.constant dense<0.000000e+00> : vector<8x5xf32>
    %321 = tpu.matmul %320, %235, %cst_110 {dimension_numbers = #tpu.dot_dimension_numbers<[1], [0], [0], [1], [0, 0, 1, 1], [], []>} : vector<8x5xf32>, vector<5x5xf32>, vector<8x5xf32> -> vector<8x5xf32>
    %322 = vector.broadcast %317 : vector<8x1xf32> to vector<8x5xf32>
    %323 = arith.addf %315, %322 : vector<8x5xf32>
    %324 = math.log %321 : vector<8x5xf32>
    %325 = arith.addf %323, %324 : vector<8x5xf32>
    %326 = vector.extract_strided_slice %188 {offsets = [40, 0], sizes = [8, 1], strides = [1, 1]} : vector<64x1xf32> to vector<8x1xf32>
    %327 = vector.broadcast %326 : vector<8x1xf32> to vector<8x5xf32>
    %328 = arith.mulf %325, %327 : vector<8x5xf32>
    %cst_111 = arith.constant 1.000000e+00 : f32
    %329 = vector.broadcast %cst_111 : f32 to vector<8x1xf32>
    %330 = arith.subf %329, %326 : vector<8x1xf32>
    %331 = vector.broadcast %330 : vector<8x1xf32> to vector<8x5xf32>
    %332 = arith.mulf %314, %331 : vector<8x5xf32>
    %333 = arith.addf %328, %332 : vector<8x5xf32>
    %334 = vector.extract_strided_slice %184 {offsets = [48, 0], sizes = [8, 5], strides = [1, 1]} : vector<64x5xf32> to vector<8x5xf32>
    %cst_112 = arith.constant dense<0xFF800000> : vector<8xf32>
    %335 = vector.multi_reduction <maximumf>, %333, %cst_112 [1] : vector<8x5xf32> to vector<8xf32>
    %336 = vector.shape_cast %335 : vector<8xf32> to vector<8x1xf32>
    %337 = vector.broadcast %336 : vector<8x1xf32> to vector<8x5xf32>
    %338 = arith.subf %333, %337 : vector<8x5xf32>
    %339 = math.exp %338 : vector<8x5xf32>
    %cst_113 = arith.constant dense<0.000000e+00> : vector<8x5xf32>
    %340 = tpu.matmul %339, %235, %cst_113 {dimension_numbers = #tpu.dot_dimension_numbers<[1], [0], [0], [1], [0, 0, 1, 1], [], []>} : vector<8x5xf32>, vector<5x5xf32>, vector<8x5xf32> -> vector<8x5xf32>
    %341 = vector.broadcast %336 : vector<8x1xf32> to vector<8x5xf32>
    %342 = arith.addf %334, %341 : vector<8x5xf32>
    %343 = math.log %340 : vector<8x5xf32>
    %344 = arith.addf %342, %343 : vector<8x5xf32>
    %345 = vector.extract_strided_slice %188 {offsets = [48, 0], sizes = [8, 1], strides = [1, 1]} : vector<64x1xf32> to vector<8x1xf32>
    %346 = vector.broadcast %345 : vector<8x1xf32> to vector<8x5xf32>
    %347 = arith.mulf %344, %346 : vector<8x5xf32>
    %cst_114 = arith.constant 1.000000e+00 : f32
    %348 = vector.broadcast %cst_114 : f32 to vector<8x1xf32>
    %349 = arith.subf %348, %345 : vector<8x1xf32>
    %350 = vector.broadcast %349 : vector<8x1xf32> to vector<8x5xf32>
    %351 = arith.mulf %333, %350 : vector<8x5xf32>
    %352 = arith.addf %347, %351 : vector<8x5xf32>
    %353 = vector.extract_strided_slice %184 {offsets = [56, 0], sizes = [8, 5], strides = [1, 1]} : vector<64x5xf32> to vector<8x5xf32>
    %cst_115 = arith.constant dense<0xFF800000> : vector<8xf32>
    %354 = vector.multi_reduction <maximumf>, %352, %cst_115 [1] : vector<8x5xf32> to vector<8xf32>
    %355 = vector.shape_cast %354 : vector<8xf32> to vector<8x1xf32>
    %356 = vector.broadcast %355 : vector<8x1xf32> to vector<8x5xf32>
    %357 = arith.subf %352, %356 : vector<8x5xf32>
    %358 = math.exp %357 : vector<8x5xf32>
    %cst_116 = arith.constant dense<0.000000e+00> : vector<8x5xf32>
    %359 = tpu.matmul %358, %235, %cst_116 {dimension_numbers = #tpu.dot_dimension_numbers<[1], [0], [0], [1], [0, 0, 1, 1], [], []>} : vector<8x5xf32>, vector<5x5xf32>, vector<8x5xf32> -> vector<8x5xf32>
    %360 = vector.broadcast %355 : vector<8x1xf32> to vector<8x5xf32>
    %361 = arith.addf %353, %360 : vector<8x5xf32>
    %362 = math.log %359 : vector<8x5xf32>
    %363 = arith.addf %361, %362 : vector<8x5xf32>
    %364 = vector.extract_strided_slice %188 {offsets = [56, 0], sizes = [8, 1], strides = [1, 1]} : vector<64x1xf32> to vector<8x1xf32>
    %365 = vector.broadcast %364 : vector<8x1xf32> to vector<8x5xf32>
    %366 = arith.mulf %363, %365 : vector<8x5xf32>
    %cst_117 = arith.constant 1.000000e+00 : f32
    %367 = vector.broadcast %cst_117 : f32 to vector<8x1xf32>
    %368 = arith.subf %367, %364 : vector<8x1xf32>
    %369 = vector.broadcast %368 : vector<8x1xf32> to vector<8x5xf32>
    %370 = arith.mulf %352, %369 : vector<8x5xf32>
    %371 = arith.addf %366, %370 : vector<8x5xf32>
    %372 = vector.broadcast %187 : vector<1x5xf32> to vector<8x5xf32>
    %373 = arith.addf %371, %372 : vector<8x5xf32>
    %cst_118 = arith.constant dense<0xFF800000> : vector<8xf32>
    %374 = vector.multi_reduction <maximumf>, %373, %cst_118 [1] : vector<8x5xf32> to vector<8xf32>
    %375 = vector.shape_cast %374 : vector<8xf32> to vector<8x1xf32>
    %376 = vector.broadcast %375 : vector<8x1xf32> to vector<8x5xf32>
    %377 = arith.subf %373, %376 : vector<8x5xf32>
    %378 = math.exp %377 : vector<8x5xf32>
    %cst_119 = arith.constant dense<0.000000e+00> : vector<8xf32>
    %379 = vector.multi_reduction <add>, %378, %cst_119 [1] : vector<8x5xf32> to vector<8xf32>
    %380 = vector.shape_cast %379 : vector<8xf32> to vector<8x1xf32>
    %381 = math.log %380 : vector<8x1xf32>
    %382 = arith.addf %375, %381 : vector<8x1xf32>
    %383 = vector.extract_strided_slice %188 {offsets = [0, 0], sizes = [8, 1], strides = [1, 1]} : vector<64x1xf32> to vector<8x1xf32>
    %384 = arith.subf %234, %382 : vector<8x1xf32>
    %385 = arith.mulf %384, %383 : vector<8x1xf32>
    %386 = vector.shape_cast %385 : vector<8x1xf32> to vector<1x8x1xf32>
    %cst_120 = arith.constant dense<0.000000e+00> : vector<1xf32>
    %387 = vector.multi_reduction <add>, %386, %cst_120 [1, 2] : vector<1x8x1xf32> to vector<1xf32>
    %388 = vector.shape_cast %387 : vector<1xf32> to vector<1x1x1xf32>
    %389 = vector.extract %388[0, 0, 0] : f32 from vector<1x1x1xf32>
    %cst_121 = arith.constant 0.000000e+00 : f32
    %390 = arith.subf %cst_121, %389 : f32
    %c0_122 = arith.constant 0 : index
    %c0_123 = arith.constant 0 : index
    %391 = memref.load %arg12[%c0_122, %c0_123] : memref<1x1xf32, #tpu.memory_space<smem>>
    memref.store %390, %arg12[%c0_122, %c0_123] : memref<1x1xf32, #tpu.memory_space<smem>>
    return
  }
}

</mosaic_0001>

<llo_original>
// kernel: bilstm_crf_forward.1
$region0: #{bilstm_crf_forward.1}
  #allocation0 [shape = 'u32[]', space=smem, size = 0x4, offset = 0x4, fixed_abs, tag = 'smem constant byte address 0x4 - core index']
  #allocation1 [shape = 'u32[144,128]{1,0:T(1,128)}', space=vmem, size = 0x12000, scoped, tag = 'internal scratch']
  #allocation2 [shape = 'f32[64,256]{1,0:T(8,128)}', space=vmem, size = 0x10000, scoped, tag = 'scratch operand']
  %s0 = inlined_call_operand.vmem [shape: s32[64,1], index: 0, kind: input, shape index: {}]
  %s1 = inlined_call_operand.vmem [shape: f32[20,256], index: 1, kind: input, shape index: {}]
  %s2 = inlined_call_operand.vmem [shape: f32[128,128], index: 2, kind: input, shape index: {}]
  %s3 = inlined_call_operand.vmem [shape: f32[8,128], index: 3, kind: input, shape index: {}]
  %s4 = inlined_call_operand.vmem [shape: f32[8,128], index: 4, kind: input, shape index: {}]
  %s5 = inlined_call_operand.vmem [shape: f32[256,5], index: 5, kind: input, shape index: {}]
  %s6 = inlined_call_operand.vmem [shape: f32[1,5], index: 6, kind: input, shape index: {}]
  %s7 = inlined_call_operand.vmem [shape: s32[64,1], index: 7, kind: input, shape index: {}]
  %s8 = inlined_call_operand.vmem [shape: f32[64,1], index: 8, kind: input, shape index: {}]
  %s9 = inlined_call_operand.vmem [shape: f32[5,5], index: 9, kind: input, shape index: {}]
  %s10 = inlined_call_operand.vmem [shape: f32[1,5], index: 10, kind: input, shape index: {}]
  %s11 = inlined_call_operand.vmem [shape: f32[1,5], index: 11, kind: input, shape index: {}]
  %s12 = inlined_call_operand.hbm [shape: f32[1,1], index: 12, kind: output, shape index: {}]
  %s13 = sld [smem:[#allocation0]]
  $region58: #{bilstm_crf_forward.1} parent=0
    _
  %s15 = ssub.s32 1, %s13
  %s16 = scalar_select 0, %s15, %s13
  $region1: #{bilstm_crf_forward.1} parent=0
    #allocation3 [shape = 'u8[512]{0}', space=smem, size = 0x200, scoped, tag = 'output window, operand 0, single buffered']
    #allocation4 [shape = 's32[1]{0}', space=sflag, size = 0x4, scoped, tag = 'scoped memory for bilstm_crf_forward.1']
    %17 = vsyncpa [#allocation4], 0
    // Predicated region
    $region2: #{bilstm_crf_forward.1} parent=1 // pred_check
      _
    $region3: #{bilstm_crf_forward.1} parent=1 // pred_check_branch
      %19 = sbr.rel (0) target = $region5
    $region4: #{bilstm_crf_forward.1} parent=1 // pred_region
      _
    $region5: #{bilstm_crf_forward.1} parent=1 // pred_fallthru
      _
    // Predicated region
    $region6: #{bilstm_crf_forward.1} parent=1 // pred_check
      _
    $region7: #{bilstm_crf_forward.1} parent=1 // pred_check_branch
      %21 = sbr.rel (0) target = $region9
    $region8: #{bilstm_crf_forward.1} parent=1 // pred_region
      _
    $region9: #{bilstm_crf_forward.1} parent=1 // pred_fallthru
      _
    // Predicated region
    $region10: #{bilstm_crf_forward.1} parent=1 // pred_check
      _
    $region11: #{bilstm_crf_forward.1} parent=1 // pred_check_branch
      %23 = sbr.rel (0) target = $region13
    $region12: #{bilstm_crf_forward.1} parent=1 // pred_region
      _
    $region13: #{bilstm_crf_forward.1} parent=1 // pred_fallthru
      _
    // Predicated region
    $region14: #{bilstm_crf_forward.1} parent=1 // pred_check
      _
    $region15: #{bilstm_crf_forward.1} parent=1 // pred_check_branch
      %25 = sbr.rel (0) target = $region17
    $region16: #{bilstm_crf_forward.1} parent=1 // pred_region
      _
    $region17: #{bilstm_crf_forward.1} parent=1 // pred_fallthru
      _
    // Predicated region
    $region18: #{bilstm_crf_forward.1} parent=1 // pred_check
      _
    $region19: #{bilstm_crf_forward.1} parent=1 // pred_check_branch
      %27 = sbr.rel (0) target = $region21
    $region20: #{bilstm_crf_forward.1} parent=1 // pred_region
      _
    $region21: #{bilstm_crf_forward.1} parent=1 // pred_fallthru
      _
    // Predicated region
    $region22: #{bilstm_crf_forward.1} parent=1 // pred_check
      _
    $region23: #{bilstm_crf_forward.1} parent=1 // pred_check_branch
      %29 = sbr.rel (0) target = $region25
    $region24: #{bilstm_crf_forward.1} parent=1 // pred_region
      _
    $region25: #{bilstm_crf_forward.1} parent=1 // pred_fallthru
      _
    // Predicated region
    $region26: #{bilstm_crf_forward.1} parent=1 // pred_check
      _
    $region27: #{bilstm_crf_forward.1} parent=1 // pred_check_branch
      %31 = sbr.rel (0) target = $region29
    $region28: #{bilstm_crf_forward.1} parent=1 // pred_region
      _
    $region29: #{bilstm_crf_forward.1} parent=1 // pred_fallthru
      _
    // Predicated region
    $region30: #{bilstm_crf_forward.1} parent=1 // pred_check
      _
    $region31: #{bilstm_crf_forward.1} parent=1 // pred_check_branch
      %33 = sbr.rel (0) target = $region33
    $region32: #{bilstm_crf_forward.1} parent=1 // pred_region
      _
    $region33: #{bilstm_crf_forward.1} parent=1 // pred_fallthru
      _
    // Predicated region
    $region34: #{bilstm_crf_forward.1} parent=1 // pred_check
      _
    $region35: #{bilstm_crf_forward.1} parent=1 // pred_check_branch
      %35 = sbr.rel (0) target = $region37
    $region36: #{bilstm_crf_forward.1} parent=1 // pred_region
      _
    $region37: #{bilstm_crf_forward.1} parent=1 // pred_fallthru
      _
    // Predicated region
    $region38: #{bilstm_crf_forward.1} parent=1 // pred_check
      _
    $region39: #{bilstm_crf_forward.1} parent=1 // pred_check_branch
      %37 = sbr.rel (0) target = $region41
    $region40: #{bilstm_crf_forward.1} parent=1 // pred_region
      _
    $region41: #{bilstm_crf_forward.1} parent=1 // pred_fallthru
      _
    // Predicated region
    $region42: #{bilstm_crf_forward.1} parent=1 // pred_check
      _
    $region43: #{bilstm_crf_forward.1} parent=1 // pred_check_branch
      %39 = sbr.rel (0) target = $region45
    $region44: #{bilstm_crf_forward.1} parent=1 // pred_region
      _
    $region45: #{bilstm_crf_forward.1} parent=1 // pred_fallthru
      _
    // Predicated region
    $region46: #{bilstm_crf_forward.1} parent=1 // pred_check
      _
    $region47: #{bilstm_crf_forward.1} parent=1 // pred_check_branch
      %41 = sbr.rel (0) target = $region49
    $region48: #{bilstm_crf_forward.1} parent=1 // pred_region
      _
    $region49: #{bilstm_crf_forward.1} parent=1 // pred_fallthru
      _
    %v42 = vld [vmem:[%s0] sm:$0xff]
    %v43 = vld [vmem:[%s0 + $0x8] sm:$0xff]
    %v44 = vld [vmem:[%s0 + $0x10] sm:$0xff]
    %v45 = vld [vmem:[%s0 + $0x18] sm:$0xff]
    %v46 = vld [vmem:[%s0 + $0x20] sm:$0xff]
    %v47 = vld [vmem:[%s0 + $0x28] sm:$0xff]
    %v48 = vld [vmem:[%s0 + $0x30] sm:$0xff]
    %v49 = vld [vmem:[%s0 + $0x38] sm:$0xff]
    %v50 = vlaneseq
    %v51 = vand.u32 %v50, 127
    %52 = vset.pattern.permute.xlu0 0
    %53 = vperm.xlu0 %52, %v42
    %v54 = vpop.permute.xlu0 %53
    %55 = vset.pattern.permute.xlu0 0
    %56 = vperm.xlu0 %55, %v43
    %v57 = vpop.permute.xlu0 %56
    %58 = vset.pattern.permute.xlu0 0
    %59 = vperm.xlu0 %58, %v44
    %v60 = vpop.permute.xlu0 %59
    %61 = vset.pattern.permute.xlu0 0
    %62 = vperm.xlu0 %61, %v45
    %v63 = vpop.permute.xlu0 %62
    %64 = vset.pattern.permute.xlu0 0
    %65 = vperm.xlu0 %64, %v46
    %v66 = vpop.permute.xlu0 %65
    %67 = vset.pattern.permute.xlu0 0
    %68 = vperm.xlu0 %67, %v47
    %v69 = vpop.permute.xlu0 %68
    %70 = vset.pattern.permute.xlu0 0
    %71 = vperm.xlu0 %70, %v48
    %v72 = vpop.permute.xlu0 %71
    %73 = vset.pattern.permute.xlu0 0
    %74 = vperm.xlu0 %73, %v49
    %v75 = vpop.permute.xlu0 %74
    %vm76 = vcmp.eq.s32.totalorder %v54, %v51
    %vm77 = vcmp.eq.s32.totalorder %v57, %v51
    %vm78 = vcmp.eq.s32.totalorder %v60, %v51
    %vm79 = vcmp.eq.s32.totalorder %v63, %v51
    %vm80 = vcmp.eq.s32.totalorder %v66, %v51
    %vm81 = vcmp.eq.s32.totalorder %v69, %v51
    %vm82 = vcmp.eq.s32.totalorder %v72, %v51
    %vm83 = vcmp.eq.s32.totalorder %v75, %v51
    %v84 = vsel %vm76, 1, 0
    %v85 = vsel %vm77, 1, 0
    %v86 = vsel %vm78, 1, 0
    %v87 = vsel %vm79, 1, 0
    %v88 = vsel %vm80, 1, 0
    %v89 = vsel %vm81, 1, 0
    %v90 = vsel %vm82, 1, 0
    %v91 = vsel %vm83, 1, 0
    %v92 = vcvt.s32.f32 %v84
    %v93 = vcvt.s32.f32 %v85
    %v94 = vcvt.s32.f32 %v86
    %v95 = vcvt.s32.f32 %v87
    %v96 = vcvt.s32.f32 %v88
    %v97 = vcvt.s32.f32 %v89
    %v98 = vcvt.s32.f32 %v90
    %v99 = vcvt.s32.f32 %v91
    %v100 = vld [vmem:[%s1] sm:$0xff]
    %v101 = vld [vmem:[%s1 + $0x8] sm:$0xff]
    %v102 = vld [vmem:[%s1 + $0x10] sm:$0xff]
    %v103 = vld [vmem:[%s1 + $0x18] sm:$0xff]
    %v104 = vld [vmem:[%s1 + $0x20] sm:$0xf]
    %v105 = vld [vmem:[%s1 + $0x28] sm:$0xf]
    %vm106 = vcmask 162816
    %v108 = vsel %vm106, %v92, 0
    %v111 = vsel %vm106, %v93, 0
    %v114 = vsel %vm106, %v94, 0
    %v117 = vsel %vm106, %v95, 0
    %v120 = vsel %vm106, %v96, 0
    %v123 = vsel %vm106, %v97, 0
    %v126 = vsel %vm106, %v98, 0
    %v129 = vsel %vm106, %v99, 0
    %vm131 = vcmask 1043456
    %v133 = vsel %vm131, %v104, 0
    %v136 = vsel %vm131, %v105, 0
    %138 = vmatprep.subr.mxu0 0.0
    %139 = vmatpush1.msra.mxu0 0.0
    %140 = vmatprep.subr.mxu0 0.0
    %141 = vmatpush1.msra.mxu0 0.0
    %142 = vmatprep.subr.mxu0 0.0
    %143 = vmatpush1.msra.mxu0 0.0
    %144 = vmatprep.subr.mxu0 0.0
    %145 = vmatpush1.msra.mxu0 0.0
    %146 = vmatprep.subr.mxu0 0.0
    %147 = vmatpush1.msra.mxu0 0.0
    %148 = vmatprep.subr.mxu0 0.0
    %149 = vmatpush1.msra.mxu0 0.0
    %150 = vmatprep.subr.mxu0 0.0
    %151 = vmatpush1.msra.mxu0 0.0
    %152 = vmatprep.subr.mxu0 0.0
    %153 = vmatpush1.msra.mxu0 0.0
    %154 = vmatprep.subr.mxu0 0.0
    %155 = vmatpush1.msra.mxu0 0.0
    %156 = vmatprep.subr.mxu0 0.0
    %157 = vmatpush1.msra.mxu0 0.0
    %158 = vmatprep.subr.mxu0 0.0
    %159 = vmatpush1.msra.mxu0 0.0
    %160 = vmatprep.subr.mxu0 0.0
    %161 = vmatpush1.msra.mxu0 0.0
    %162 = vmatprep.subr.mxu0 0.0
    %163 = vmatpush1.msra.mxu0 0.0
    %164 = vmatprep.subr.mxu0 %v136
    %165 = vmatpush1.msra.mxu0 %v133
    %166 = vmatprep.subr.mxu0 %v103
    %167 = vmatpush1.msra.mxu0 %v102
    %168 = vmatprep.subr.mxu0 %v101
    %169 = vmatpush1.msra.mxu0 %v100
    %170 = vmatprep.subr.mxu0 0.0
    %171 = vmatpush2.msra.mxu0 0.0
    %172 = vmatprep.subr.mxu0 0.0
    %173 = vmatpush2.msra.mxu0 0.0
    %174 = vmatprep.subr.mxu0 0.0
    %175 = vmatpush2.msra.mxu0 0.0
    %176 = vmatprep.subr.mxu0 0.0
    %177 = vmatpush2.msra.mxu0 0.0
    %178 = vmatprep.subr.mxu0 0.0
    %179 = vmatpush2.msra.mxu0 0.0
    %180 = vmatprep.subr.mxu0 0.0
    %181 = vmatpush2.msra.mxu0 0.0
    %182 = vmatprep.subr.mxu0 0.0
    %183 = vmatpush2.msra.mxu0 0.0
    %184 = vmatprep.subr.mxu0 0.0
    %185 = vmatpush2.msra.mxu0 0.0
    %186 = vmatprep.subr.mxu0 0.0
    %187 = vmatpush2.msra.mxu0 0.0
    %188 = vmatprep.subr.mxu0 0.0
    %189 = vmatpush2.msra.mxu0 0.0
    %190 = vmatprep.subr.mxu0 0.0
    %191 = vmatpush2.msra.mxu0 0.0
    %192 = vmatprep.subr.mxu0 0.0
    %193 = vmatpush2.msra.mxu0 0.0
    %194 = vmatprep.subr.mxu0 0.0
    %195 = vmatpush2.msra.mxu0 0.0
    %196 = vmatprep.subr.mxu0 0.0
    %197 = vmatpush2.msra.mxu0 0.0
    %198 = vmatprep.subr.mxu0 0.0
    %199 = vmatpush2.msra.mxu0 0.0
    %200 = vmatprep.subr.mxu0 0.0
    %201 = vmatpush2.msra.mxu0 0.0
    %202 = vmatprep.mubr.f32.mxu0 0.0
    %203 = vmatmul.mubr.f32.gmra.mxu0 %v108
    %v204 = vpop.f32.mrf.mxu0
    %v205 = vadd.f32 0.0, %v204
    %v206 = vpop.f32.mrf.mxu0
    %v207 = vadd.f32 0.0, %v206
    %208 = vmatprep.mubr.f32.mxu0 0.0
    %209 = vmatmul.mubr.f32.gmra.mxu0 %v111
    %v210 = vpop.f32.mrf.mxu0
    %v211 = vadd.f32 0.0, %v210
    %v212 = vpop.f32.mrf.mxu0
    %v213 = vadd.f32 0.0, %v212
    %214 = vmatprep.mubr.f32.mxu0 0.0
    %215 = vmatmul.mubr.f32.gmra.mxu0 %v114
    %v216 = vpop.f32.mrf.mxu0
    %v217 = vadd.f32 0.0, %v216
    %v218 = vpop.f32.mrf.mxu0
    %v219 = vadd.f32 0.0, %v218
    %220 = vmatprep.mubr.f32.mxu0 0.0
    %221 = vmatmul.mubr.f32.gmra.mxu0 %v117
    %v222 = vpop.f32.mrf.mxu0
    %v223 = vadd.f32 0.0, %v222
    %v224 = vpop.f32.mrf.mxu0
    %v225 = vadd.f32 0.0, %v224
    %226 = vmatprep.mubr.f32.mxu0 0.0
    %227 = vmatmul.mubr.f32.gmra.mxu0 %v120
    %v228 = vpop.f32.mrf.mxu0
    %v229 = vadd.f32 0.0, %v228
    %v230 = vpop.f32.mrf.mxu0
    %v231 = vadd.f32 0.0, %v230
    %232 = vmatprep.mubr.f32.mxu0 0.0
    %233 = vmatmul.mubr.f32.gmra.mxu0 %v123
    %v234 = vpop.f32.mrf.mxu0
    %v235 = vadd.f32 0.0, %v234
    %v236 = vpop.f32.mrf.mxu0
    %v237 = vadd.f32 0.0, %v236
    %238 = vmatprep.mubr.f32.mxu0 0.0
    %239 = vmatmul.mubr.f32.gmra.mxu0 %v126
    %v240 = vpop.f32.mrf.mxu0
    %v241 = vadd.f32 0.0, %v240
    %v242 = vpop.f32.mrf.mxu0
    %v243 = vadd.f32 0.0, %v242
    %244 = vmatprep.mubr.f32.mxu0 0.0
    %245 = vmatmul.mubr.f32.gmra.mxu0 %v129
    %v246 = vpop.f32.mrf.mxu0
    %v247 = vadd.f32 0.0, %v246
    %v248 = vpop.f32.mrf.mxu0
    %v249 = vadd.f32 0.0, %v248
    %250 = vdwg.mxu0
    %v251 = vld [vmem:[%s2] sm:$0xff]
    %v252 = vld [vmem:[%s2 + $0x8] sm:$0xff]
    %v253 = vld [vmem:[%s2 + $0x10] sm:$0xff]
    %v254 = vld [vmem:[%s2 + $0x18] sm:$0xff]
    %v255 = vld [vmem:[%s2 + $0x20] sm:$0xff]
    %v256 = vld [vmem:[%s2 + $0x28] sm:$0xff]
    %v257 = vld [vmem:[%s2 + $0x30] sm:$0xff]
    %v258 = vld [vmem:[%s2 + $0x38] sm:$0xff]
    %v259 = vld [vmem:[%s2 + $0x40] sm:$0xff]
    %v260 = vld [vmem:[%s2 + $0x48] sm:$0xff]
    %v261 = vld [vmem:[%s2 + $0x50] sm:$0xff]
    %v262 = vld [vmem:[%s2 + $0x58] sm:$0xff]
    %v263 = vld [vmem:[%s2 + $0x60] sm:$0xff]
    %v264 = vld [vmem:[%s2 + $0x68] sm:$0xff]
    %v265 = vld [vmem:[%s2 + $0x70] sm:$0xff]
    %v266 = vld [vmem:[%s2 + $0x78] sm:$0xff]
    %v267 = vld [vmem:[%s3] sm:$0xff]
    %v268 = vld [vmem:[%s4] sm:$0xff]
    %v269 = vadd.f32 %v205, %v249
    %270 = vmatprep.subr.mxu0 0.0
    %271 = vmatpush1.msra.mxu0 %v266
    %272 = vmatprep.subr.mxu0 0.0
    %273 = vmatpush1.msra.mxu0 %v265
    %274 = vmatprep.subr.mxu0 0.0
    %275 = vmatpush1.msra.mxu0 %v264
    %276 = vmatprep.subr.mxu0 0.0
    %277 = vmatpush1.msra.mxu0 %v263
    %278 = vmatprep.subr.mxu0 0.0
    %279 = vmatpush1.msra.mxu0 %v262
    %280 = vmatprep.subr.mxu0 0.0
    %281 = vmatpush1.msra.mxu0 %v261
    %282 = vmatprep.subr.mxu0 0.0
    %283 = vmatpush1.msra.mxu0 %v260
    %284 = vmatprep.subr.mxu0 0.0
    %285 = vmatpush1.msra.mxu0 %v259
    %286 = vmatprep.subr.mxu0 0.0
    %287 = vmatpush1.msra.mxu0 %v258
    %288 = vmatprep.subr.mxu0 0.0
    %289 = vmatpush1.msra.mxu0 %v257
    %290 = vmatprep.subr.mxu0 0.0
    %291 = vmatpush1.msra.mxu0 %v256
    %292 = vmatprep.subr.mxu0 0.0
    %293 = vmatpush1.msra.mxu0 %v255
    %294 = vmatprep.subr.mxu0 0.0
    %295 = vmatpush1.msra.mxu0 %v254
    %296 = vmatprep.subr.mxu0 0.0
    %297 = vmatpush1.msra.mxu0 %v253
    %298 = vmatprep.subr.mxu0 0.0
    %299 = vmatpush1.msra.mxu0 %v252
    %300 = vmatprep.subr.mxu0 0.0
    %301 = vmatpush1.msra.mxu0 %v251
    %302 = vmatprep.subr.mxu0 0.0
    %303 = vmatpush2.msra.mxu0 0.0
    %304 = vmatprep.subr.mxu0 0.0
    %305 = vmatpush2.msra.mxu0 0.0
    %306 = vmatprep.subr.mxu0 0.0
    %307 = vmatpush2.msra.mxu0 0.0
    %308 = vmatprep.subr.mxu0 0.0
    %309 = vmatpush2.msra.mxu0 0.0
    %310 = vmatprep.subr.mxu0 0.0
    %311 = vmatpush2.msra.mxu0 0.0
    %312 = vmatprep.subr.mxu0 0.0
    %313 = vmatpush2.msra.mxu0 0.0
    %314 = vmatprep.subr.mxu0 0.0
    %315 = vmatpush2.msra.mxu0 0.0
    %316 = vmatprep.subr.mxu0 0.0
    %317 = vmatpush2.msra.mxu0 0.0
    %318 = vmatprep.subr.mxu0 0.0
    %319 = vmatpush2.msra.mxu0 0.0
    %320 = vmatprep.subr.mxu0 0.0
    %321 = vmatpush2.msra.mxu0 0.0
    %322 = vmatprep.subr.mxu0 0.0
    %323 = vmatpush2.msra.mxu0 0.0
    %324 = vmatprep.subr.mxu0 0.0
    %325 = vmatpush2.msra.mxu0 0.0
    %326 = vmatprep.subr.mxu0 0.0
    %327 = vmatpush2.msra.mxu0 0.0
    %328 = vmatprep.subr.mxu0 0.0
    %329 = vmatpush2.msra.mxu0 0.0
    %330 = vmatprep.subr.mxu0 0.0
    %331 = vmatpush2.msra.mxu0 0.0
    %332 = vmatprep.subr.mxu0 0.0
    %333 = vmatpush2.msra.mxu0 0.0
    %334 = vmatprep.mubr.f32.mxu0 0.0
    %335 = vmatmul.mubr.f32.gmra.mxu0 %v267
    %v336 = vpop.f32.mrf.mxu0
    %v337 = vadd.f32 0.0, %v336
    %v338 = vpop.f32.mrf.mxu0
    %339 = vdwg.mxu0
    %v340 = vadd.f32 %v269, %v337
    %v341 = vxor.u32 %v340, 2147483648
    %v342 = vmul.f32 %v341, 1.442695
    %v343 = vpow.pop %v342
    %v344 = vadd.f32 %v343, 1.0
    %v345 = vrcp.pop %v344
    %v346 = vmul.f32 1.0, %v345
    %347 = vrot.lane.b32.xlu0 %v340, 32
    %v348 = vpop.permute.xlu0 %347
    %v349 = vtanh.pop %v348
    %350 = vrot.lane.b32.xlu0 %v346, 96
    %v351 = vpop.permute.xlu0 %350
    %352 = vrot.lane.b32.xlu0 %v346, 64
    %v353 = vpop.permute.xlu0 %352
    %v354 = vmul.f32 %v351, %v268
    %v355 = vmul.f32 %v346, %v349
    %v356 = vadd.f32 %v354, %v355
    %v357 = vtanh.pop %v356
    %v358 = vmul.f32 %v353, %v357
    %359 = vst [vmem:[#allocation2] sm:$0xff] %v358
    %360 = vst [vmem:[#allocation2 + $0x78] sm:$0xff] %v358
    %v361 = vadd.f32 %v211, %v243
    %362 = vmatprep.subr.mxu0 0.0
    %363 = vmatpush1.msra.mxu0 %v266
    %364 = vmatprep.subr.mxu0 0.0
    %365 = vmatpush1.msra.mxu0 %v265
    %366 = vmatprep.subr.mxu0 0.0
    %367 = vmatpush1.msra.mxu0 %v264
    %368 = vmatprep.subr.mxu0 0.0
    %369 = vmatpush1.msra.mxu0 %v263
    %370 = vmatprep.subr.mxu0 0.0
    %371 = vmatpush1.msra.mxu0 %v262
    %372 = vmatprep.subr.mxu0 0.0
    %373 = vmatpush1.msra.mxu0 %v261
    %374 = vmatprep.subr.mxu0 0.0
    %375 = vmatpush1.msra.mxu0 %v260
    %376 = vmatprep.subr.mxu0 0.0
    %377 = vmatpush1.msra.mxu0 %v259
    %378 = vmatprep.subr.mxu0 0.0
    %379 = vmatpush1.msra.mxu0 %v258
    %380 = vmatprep.subr.mxu0 0.0
    %381 = vmatpush1.msra.mxu0 %v257
    %382 = vmatprep.subr.mxu0 0.0
    %383 = vmatpush1.msra.mxu0 %v256
    %384 = vmatprep.subr.mxu0 0.0
    %385 = vmatpush1.msra.mxu0 %v255
    %386 = vmatprep.subr.mxu0 0.0
    %387 = vmatpush1.msra.mxu0 %v254
    %388 = vmatprep.subr.mxu0 0.0
    %389 = vmatpush1.msra.mxu0 %v253
    %390 = vmatprep.subr.mxu0 0.0
    %391 = vmatpush1.msra.mxu0 %v252
    %392 = vmatprep.subr.mxu0 0.0
    %393 = vmatpush1.msra.mxu0 %v251
    %394 = vmatprep.subr.mxu0 0.0
    %395 = vmatpush2.msra.mxu0 0.0
    %396 = vmatprep.subr.mxu0 0.0
    %397 = vmatpush2.msra.mxu0 0.0
    %398 = vmatprep.subr.mxu0 0.0
    %399 = vmatpush2.msra.mxu0 0.0
    %400 = vmatprep.subr.mxu0 0.0
    %401 = vmatpush2.msra.mxu0 0.0
    %402 = vmatprep.subr.mxu0 0.0
    %403 = vmatpush2.msra.mxu0 0.0
    %404 = vmatprep.subr.mxu0 0.0
    %405 = vmatpush2.msra.mxu0 0.0
    %406 = vmatprep.subr.mxu0 0.0
    %407 = vmatpush2.msra.mxu0 0.0
    %408 = vmatprep.subr.mxu0 0.0
    %409 = vmatpush2.msra.mxu0 0.0
    %410 = vmatprep.subr.mxu0 0.0
    %411 = vmatpush2.msra.mxu0 0.0
    %412 = vmatprep.subr.mxu0 0.0
    %413 = vmatpush2.msra.mxu0 0.0
    %414 = vmatprep.subr.mxu0 0.0
    %415 = vmatpush2.msra.mxu0 0.0
    %416 = vmatprep.subr.mxu0 0.0
    %417 = vmatpush2.msra.mxu0 0.0
    %418 = vmatprep.subr.mxu0 0.0
    %419 = vmatpush2.msra.mxu0 0.0
    %420 = vmatprep.subr.mxu0 0.0
    %421 = vmatpush2.msra.mxu0 0.0
    %422 = vmatprep.subr.mxu0 0.0
    %423 = vmatpush2.msra.mxu0 0.0
    %424 = vmatprep.subr.mxu0 0.0
    %425 = vmatpush2.msra.mxu0 0.0
    %426 = vmatprep.mubr.f32.mxu0 0.0
    %427 = vmatmul.mubr.f32.gmra.mxu0 %v358
    %v428 = vpop.f32.mrf.mxu0
    %v429 = vadd.f32 0.0, %v428
    %v430 = vpop.f32.mrf.mxu0
    %431 = vdwg.mxu0
    %v432 = vadd.f32 %v361, %v429
    %v433 = vxor.u32 %v432, 2147483648
    %v434 = vmul.f32 %v433, 1.442695
    %v435 = vpow.pop %v434
    %v436 = vadd.f32 %v435, 1.0
    %v437 = vrcp.pop %v436
    %v438 = vmul.f32 1.0, %v437
    %439 = vrot.lane.b32.xlu0 %v432, 32
    %v440 = vpop.permute.xlu0 %439
    %v441 = vtanh.pop %v440
    %442 = vrot.lane.b32.xlu0 %v438, 96
    %v443 = vpop.permute.xlu0 %442
    %444 = vrot.lane.b32.xlu0 %v438, 64
    %v445 = vpop.permute.xlu0 %444
    %v446 = vmul.f32 %v443, %v356
    %v447 = vmul.f32 %v438, %v441
    %v448 = vadd.f32 %v446, %v447
    %v449 = vtanh.pop %v448
    %v450 = vmul.f32 %v445, %v449
    %451 = vst [vmem:[#allocation2 + $0x10] sm:$0xff] %v450
    %452 = vst [vmem:[#allocation2 + $0x68] sm:$0xff] %v450
    %v453 = vadd.f32 %v217, %v237
    %454 = vmatprep.subr.mxu0 0.0
    %455 = vmatpush1.msra.mxu0 %v266
    %456 = vmatprep.subr.mxu0 0.0
    %457 = vmatpush1.msra.mxu0 %v265
    %458 = vmatprep.subr.mxu0 0.0
    %459 = vmatpush1.msra.mxu0 %v264
    %460 = vmatprep.subr.mxu0 0.0
    %461 = vmatpush1.msra.mxu0 %v263
    %462 = vmatprep.subr.mxu0 0.0
    %463 = vmatpush1.msra.mxu0 %v262
    %464 = vmatprep.subr.mxu0 0.0
    %465 = vmatpush1.msra.mxu0 %v261
    %466 = vmatprep.subr.mxu0 0.0
    %467 = vmatpush1.msra.mxu0 %v260
    %468 = vmatprep.subr.mxu0 0.0
    %469 = vmatpush1.msra.mxu0 %v259
    %470 = vmatprep.subr.mxu0 0.0
    %471 = vmatpush1.msra.mxu0 %v258
    %472 = vmatprep.subr.mxu0 0.0
    %473 = vmatpush1.msra.mxu0 %v257
    %474 = vmatprep.subr.mxu0 0.0
    %475 = vmatpush1.msra.mxu0 %v256
    %476 = vmatprep.subr.mxu0 0.0
    %477 = vmatpush1.msra.mxu0 %v255
    %478 = vmatprep.subr.mxu0 0.0
    %479 = vmatpush1.msra.mxu0 %v254
    %480 = vmatprep.subr.mxu0 0.0
    %481 = vmatpush1.msra.mxu0 %v253
    %482 = vmatprep.subr.mxu0 0.0
    %483 = vmatpush1.msra.mxu0 %v252
    %484 = vmatprep.subr.mxu0 0.0
    %485 = vmatpush1.msra.mxu0 %v251
    %486 = vmatprep.subr.mxu0 0.0
    %487 = vmatpush2.msra.mxu0 0.0
    %488 = vmatprep.subr.mxu0 0.0
    %489 = vmatpush2.msra.mxu0 0.0
    %490 = vmatprep.subr.mxu0 0.0
    %491 = vmatpush2.msra.mxu0 0.0
    %492 = vmatprep.subr.mxu0 0.0
    %493 = vmatpush2.msra.mxu0 0.0
    %494 = vmatprep.subr.mxu0 0.0
    %495 = vmatpush2.msra.mxu0 0.0
    %496 = vmatprep.subr.mxu0 0.0
    %497 = vmatpush2.msra.mxu0 0.0
    %498 = vmatprep.subr.mxu0 0.0
    %499 = vmatpush2.msra.mxu0 0.0
    %500 = vmatprep.subr.mxu0 0.0
    %501 = vmatpush2.msra.mxu0 0.0
    %502 = vmatprep.subr.mxu0 0.0
    %503 = vmatpush2.msra.mxu0 0.0
    %504 = vmatprep.subr.mxu0 0.0
    %505 = vmatpush2.msra.mxu0 0.0
    %506 = vmatprep.subr.mxu0 0.0
    %507 = vmatpush2.msra.mxu0 0.0
    %508 = vmatprep.subr.mxu0 0.0
    %509 = vmatpush2.msra.mxu0 0.0
    %510 = vmatprep.subr.mxu0 0.0
    %511 = vmatpush2.msra.mxu0 0.0
    %512 = vmatprep.subr.mxu0 0.0
    %513 = vmatpush2.msra.mxu0 0.0
    %514 = vmatprep.subr.mxu0 0.0
    %515 = vmatpush2.msra.mxu0 0.0
    %516 = vmatprep.subr.mxu0 0.0
    %517 = vmatpush2.msra.mxu0 0.0
    %518 = vmatprep.mubr.f32.mxu0 0.0
    %519 = vmatmul.mubr.f32.gmra.mxu0 %v450
    %v520 = vpop.f32.mrf.mxu0
    %v521 = vadd.f32 0.0, %v520
    %v522 = vpop.f32.mrf.mxu0
    %523 = vdwg.mxu0
    %v524 = vadd.f32 %v453, %v521
    %v525 = vxor.u32 %v524, 2147483648
    %v526 = vmul.f32 %v525, 1.442695
    %v527 = vpow.pop %v526
    %v528 = vadd.f32 %v527, 1.0
    %v529 = vrcp.pop %v528
    %v530 = vmul.f32 1.0, %v529
    %531 = vrot.lane.b32.xlu0 %v524, 32
    %v532 = vpop.permute.xlu0 %531
    %v533 = vtanh.pop %v532
    %534 = vrot.lane.b32.xlu0 %v530, 96
    %v535 = vpop.permute.xlu0 %534
    %536 = vrot.lane.b32.xlu0 %v530, 64
    %v537 = vpop.permute.xlu0 %536
    %v538 = vmul.f32 %v535, %v448
    %v539 = vmul.f32 %v530, %v533
    %v540 = vadd.f32 %v538, %v539
    %v541 = vtanh.pop %v540
    %v542 = vmul.f32 %v537, %v541
    %543 = vst [vmem:[#allocation2 + $0x20] sm:$0xff] %v542
    %544 = vst [vmem:[#allocation2 + $0x58] sm:$0xff] %v542
    %v545 = vadd.f32 %v223, %v231
    %546 = vmatprep.subr.mxu0 0.0
    %547 = vmatpush1.msra.mxu0 %v266
    %548 = vmatprep.subr.mxu0 0.0
    %549 = vmatpush1.msra.mxu0 %v265
    %550 = vmatprep.subr.mxu0 0.0
    %551 = vmatpush1.msra.mxu0 %v264
    %552 = vmatprep.subr.mxu0 0.0
    %553 = vmatpush1.msra.mxu0 %v263
    %554 = vmatprep.subr.mxu0 0.0
    %555 = vmatpush1.msra.mxu0 %v262
    %556 = vmatprep.subr.mxu0 0.0
    %557 = vmatpush1.msra.mxu0 %v261
    %558 = vmatprep.subr.mxu0 0.0
    %559 = vmatpush1.msra.mxu0 %v260
    %560 = vmatprep.subr.mxu0 0.0
    %561 = vmatpush1.msra.mxu0 %v259
    %562 = vmatprep.subr.mxu0 0.0
    %563 = vmatpush1.msra.mxu0 %v258
    %564 = vmatprep.subr.mxu0 0.0
    %565 = vmatpush1.msra.mxu0 %v257
    %566 = vmatprep.subr.mxu0 0.0
    %567 = vmatpush1.msra.mxu0 %v256
    %568 = vmatprep.subr.mxu0 0.0
    %569 = vmatpush1.msra.mxu0 %v255
    %570 = vmatprep.subr.mxu0 0.0
    %571 = vmatpush1.msra.mxu0 %v254
    %572 = vmatprep.subr.mxu0 0.0
    %573 = vmatpush1.msra.mxu0 %v253
    %574 = vmatprep.subr.mxu0 0.0
    %575 = vmatpush1.msra.mxu0 %v252
    %576 = vmatprep.subr.mxu0 0.0
    %577 = vmatpush1.msra.mxu0 %v251
    %578 = vmatprep.subr.mxu0 0.0
    %579 = vmatpush2.msra.mxu0 0.0
    %580 = vmatprep.subr.mxu0 0.0
    %581 = vmatpush2.msra.mxu0 0.0
    %582 = vmatprep.subr.mxu0 0.0
    %583 = vmatpush2.msra.mxu0 0.0
    %584 = vmatprep.subr.mxu0 0.0
    %585 = vmatpush2.msra.mxu0 0.0
    %586 = vmatprep.subr.mxu0 0.0
    %587 = vmatpush2.msra.mxu0 0.0
    %588 = vmatprep.subr.mxu0 0.0
    %589 = vmatpush2.msra.mxu0 0.0
    %590 = vmatprep.subr.mxu0 0.0
    %591 = vmatpush2.msra.mxu0 0.0
    %592 = vmatprep.subr.mxu0 0.0
    %593 = vmatpush2.msra.mxu0 0.0
    %594 = vmatprep.subr.mxu0 0.0
    %595 = vmatpush2.msra.mxu0 0.0
    %596 = vmatprep.subr.mxu0 0.0
    %597 = vmatpush2.msra.mxu0 0.0
    %598 = vmatprep.subr.mxu0 0.0
    %599 = vmatpush2.msra.mxu0 0.0
    %600 = vmatprep.subr.mxu0 0.0
    %601 = vmatpush2.msra.mxu0 0.0
    %602 = vmatprep.subr.mxu0 0.0
    %603 = vmatpush2.msra.mxu0 0.0
    %604 = vmatprep.subr.mxu0 0.0
    %605 = vmatpush2.msra.mxu0 0.0
    %606 = vmatprep.subr.mxu0 0.0
    %607 = vmatpush2.msra.mxu0 0.0
    %608 = vmatprep.subr.mxu0 0.0
    %609 = vmatpush2.msra.mxu0 0.0
    %610 = vmatprep.mubr.f32.mxu0 0.0
    %611 = vmatmul.mubr.f32.gmra.mxu0 %v542
    %v612 = vpop.f32.mrf.mxu0
    %v613 = vadd.f32 0.0, %v612
    %v614 = vpop.f32.mrf.mxu0
    %615 = vdwg.mxu0
    %v616 = vadd.f32 %v545, %v613
    %v617 = vxor.u32 %v616, 2147483648
    %v618 = vmul.f32 %v617, 1.442695
    %v619 = vpow.pop %v618
    %v620 = vadd.f32 %v619, 1.0
    %v621 = vrcp.pop %v620
    %v622 = vmul.f32 1.0, %v621
    %623 = vrot.lane.b32.xlu0 %v616, 32
    %v624 = vpop.permute.xlu0 %623
    %v625 = vtanh.pop %v624
    %626 = vrot.lane.b32.xlu0 %v622, 96
    %v627 = vpop.permute.xlu0 %626
    %628 = vrot.lane.b32.xlu0 %v622, 64
    %v629 = vpop.permute.xlu0 %628
    %v630 = vmul.f32 %v627, %v540
    %v631 = vmul.f32 %v622, %v625
    %v632 = vadd.f32 %v630, %v631
    %v633 = vtanh.pop %v632
    %v634 = vmul.f32 %v629, %v633
    %635 = vst [vmem:[#allocation2 + $0x30] sm:$0xff] %v634
    %636 = vst [vmem:[#allocation2 + $0x48] sm:$0xff] %v634
    %v637 = vadd.f32 %v229, %v225
    %638 = vmatprep.subr.mxu0 0.0
    %639 = vmatpush1.msra.mxu0 %v266
    %640 = vmatprep.subr.mxu0 0.0
    %641 = vmatpush1.msra.mxu0 %v265
    %642 = vmatprep.subr.mxu0 0.0
    %643 = vmatpush1.msra.mxu0 %v264
    %644 = vmatprep.subr.mxu0 0.0
    %645 = vmatpush1.msra.mxu0 %v263
    %646 = vmatprep.subr.mxu0 0.0
    %647 = vmatpush1.msra.mxu0 %v262
    %648 = vmatprep.subr.mxu0 0.0
    %649 = vmatpush1.msra.mxu0 %v261
    %650 = vmatprep.subr.mxu0 0.0
    %651 = vmatpush1.msra.mxu0 %v260
    %652 = vmatprep.subr.mxu0 0.0
    %653 = vmatpush1.msra.mxu0 %v259
    %654 = vmatprep.subr.mxu0 0.0
    %655 = vmatpush1.msra.mxu0 %v258
    %656 = vmatprep.subr.mxu0 0.0
    %657 = vmatpush1.msra.mxu0 %v257
    %658 = vmatprep.subr.mxu0 0.0
    %659 = vmatpush1.msra.mxu0 %v256
    %660 = vmatprep.subr.mxu0 0.0
    %661 = vmatpush1.msra.mxu0 %v255
    %662 = vmatprep.subr.mxu0 0.0
    %663 = vmatpush1.msra.mxu0 %v254
    %664 = vmatprep.subr.mxu0 0.0
    %665 = vmatpush1.msra.mxu0 %v253
    %666 = vmatprep.subr.mxu0 0.0
    %667 = vmatpush1.msra.mxu0 %v252
    %668 = vmatprep.subr.mxu0 0.0
    %669 = vmatpush1.msra.mxu0 %v251
    %670 = vmatprep.subr.mxu0 0.0
    %671 = vmatpush2.msra.mxu0 0.0
    %672 = vmatprep.subr.mxu0 0.0
    %673 = vmatpush2.msra.mxu0 0.0
    %674 = vmatprep.subr.mxu0 0.0
    %675 = vmatpush2.msra.mxu0 0.0
    %676 = vmatprep.subr.mxu0 0.0
    %677 = vmatpush2.msra.mxu0 0.0
    %678 = vmatprep.subr.mxu0 0.0
    %679 = vmatpush2.msra.mxu0 0.0
    %680 = vmatprep.subr.mxu0 0.0
    %681 = vmatpush2.msra.mxu0 0.0
    %682 = vmatprep.subr.mxu0 0.0
    %683 = vmatpush2.msra.mxu0 0.0
    %684 = vmatprep.subr.mxu0 0.0
    %685 = vmatpush2.msra.mxu0 0.0
    %686 = vmatprep.subr.mxu0 0.0
    %687 = vmatpush2.msra.mxu0 0.0
    %688 = vmatprep.subr.mxu0 0.0
    %689 = vmatpush2.msra.mxu0 0.0
    %690 = vmatprep.subr.mxu0 0.0
    %691 = vmatpush2.msra.mxu0 0.0
    %692 = vmatprep.subr.mxu0 0.0
    %693 = vmatpush2.msra.mxu0 0.0
    %694 = vmatprep.subr.mxu0 0.0
    %695 = vmatpush2.msra.mxu0 0.0
    %696 = vmatprep.subr.mxu0 0.0
    %697 = vmatpush2.msra.mxu0 0.0
    %698 = vmatprep.subr.mxu0 0.0
    %699 = vmatpush2.msra.mxu0 0.0
    %700 = vmatprep.subr.mxu0 0.0
    %701 = vmatpush2.msra.mxu0 0.0
    %702 = vmatprep.mubr.f32.mxu0 0.0
    %703 = vmatmul.mubr.f32.gmra.mxu0 %v634
    %v704 = vpop.f32.mrf.mxu0
    %v705 = vadd.f32 0.0, %v704
    %v706 = vpop.f32.mrf.mxu0
    %707 = vdwg.mxu0
    %v708 = vadd.f32 %v637, %v705
    %v709 = vxor.u32 %v708, 2147483648
    %v710 = vmul.f32 %v709, 1.442695
    %v711 = vpow.pop %v710
    %v712 = vadd.f32 %v711, 1.0
    %v713 = vrcp.pop %v712
    %v714 = vmul.f32 1.0, %v713
    %715 = vrot.lane.b32.xlu0 %v708, 32
    %v716 = vpop.permute.xlu0 %715
    %v717 = vtanh.pop %v716
    %718 = vrot.lane.b32.xlu0 %v714, 96
    %v719 = vpop.permute.xlu0 %718
    %720 = vrot.lane.b32.xlu0 %v714, 64
    %v721 = vpop.permute.xlu0 %720
    %v722 = vmul.f32 %v719, %v632
    %v723 = vmul.f32 %v714, %v717
    %v724 = vadd.f32 %v722, %v723
    %v725 = vtanh.pop %v724
    %v726 = vmul.f32 %v721, %v725
    %727 = vst [vmem:[#allocation2 + $0x40] sm:$0xff] %v726
    %728 = vst [vmem:[#allocation2 + $0x38] sm:$0xff] %v726
    %v729 = vadd.f32 %v235, %v219
    %730 = vmatprep.subr.mxu0 0.0
    %731 = vmatpush1.msra.mxu0 %v266
    %732 = vmatprep.subr.mxu0 0.0
    %733 = vmatpush1.msra.mxu0 %v265
    %734 = vmatprep.subr.mxu0 0.0
    %735 = vmatpush1.msra.mxu0 %v264
    %736 = vmatprep.subr.mxu0 0.0
    %737 = vmatpush1.msra.mxu0 %v263
    %738 = vmatprep.subr.mxu0 0.0
    %739 = vmatpush1.msra.mxu0 %v262
    %740 = vmatprep.subr.mxu0 0.0
    %741 = vmatpush1.msra.mxu0 %v261
    %742 = vmatprep.subr.mxu0 0.0
    %743 = vmatpush1.msra.mxu0 %v260
    %744 = vmatprep.subr.mxu0 0.0
    %745 = vmatpush1.msra.mxu0 %v259
    %746 = vmatprep.subr.mxu0 0.0
    %747 = vmatpush1.msra.mxu0 %v258
    %748 = vmatprep.subr.mxu0 0.0
    %749 = vmatpush1.msra.mxu0 %v257
    %750 = vmatprep.subr.mxu0 0.0
    %751 = vmatpush1.msra.mxu0 %v256
    %752 = vmatprep.subr.mxu0 0.0
    %753 = vmatpush1.msra.mxu0 %v255
    %754 = vmatprep.subr.mxu0 0.0
    %755 = vmatpush1.msra.mxu0 %v254
    %756 = vmatprep.subr.mxu0 0.0
    %757 = vmatpush1.msra.mxu0 %v253
    %758 = vmatprep.subr.mxu0 0.0
    %759 = vmatpush1.msra.mxu0 %v252
    %760 = vmatprep.subr.mxu0 0.0
    %761 = vmatpush1.msra.mxu0 %v251
    %762 = vmatprep.subr.mxu0 0.0
    %763 = vmatpush2.msra.mxu0 0.0
    %764 = vmatprep.subr.mxu0 0.0
    %765 = vmatpush2.msra.mxu0 0.0
    %766 = vmatprep.subr.mxu0 0.0
    %767 = vmatpush2.msra.mxu0 0.0
    %768 = vmatprep.subr.mxu0 0.0
    %769 = vmatpush2.msra.mxu0 0.0
    %770 = vmatprep.subr.mxu0 0.0
    %771 = vmatpush2.msra.mxu0 0.0
    %772 = vmatprep.subr.mxu0 0.0
    %773 = vmatpush2.msra.mxu0 0.0
    %774 = vmatprep.subr.mxu0 0.0
    %775 = vmatpush2.msra.mxu0 0.0
    %776 = vmatprep.subr.mxu0 0.0
    %777 = vmatpush2.msra.mxu0 0.0
    %778 = vmatprep.subr.mxu0 0.0
    %779 = vmatpush2.msra.mxu0 0.0
    %780 = vmatprep.subr.mxu0 0.0
    %781 = vmatpush2.msra.mxu0 0.0
    %782 = vmatprep.subr.mxu0 0.0
    %783 = vmatpush2.msra.mxu0 0.0
    %784 = vmatprep.subr.mxu0 0.0
    %785 = vmatpush2.msra.mxu0 0.0
    %786 = vmatprep.subr.mxu0 0.0
    %787 = vmatpush2.msra.mxu0 0.0
    %788 = vmatprep.subr.mxu0 0.0
    %789 = vmatpush2.msra.mxu0 0.0
    %790 = vmatprep.subr.mxu0 0.0
    %791 = vmatpush2.msra.mxu0 0.0
    %792 = vmatprep.subr.mxu0 0.0
    %793 = vmatpush2.msra.mxu0 0.0
    %794 = vmatprep.mubr.f32.mxu0 0.0
    %795 = vmatmul.mubr.f32.gmra.mxu0 %v726
    %v796 = vpop.f32.mrf.mxu0
    %v797 = vadd.f32 0.0, %v796
    %v798 = vpop.f32.mrf.mxu0
    %799 = vdwg.mxu0
    %v800 = vadd.f32 %v729, %v797
    %v801 = vxor.u32 %v800, 2147483648
    %v802 = vmul.f32 %v801, 1.442695
    %v803 = vpow.pop %v802
    %v804 = vadd.f32 %v803, 1.0
    %v805 = vrcp.pop %v804
    %v806 = vmul.f32 1.0, %v805
    %807 = vrot.lane.b32.xlu0 %v800, 32
    %v808 = vpop.permute.xlu0 %807
    %v809 = vtanh.pop %v808
    %810 = vrot.lane.b32.xlu0 %v806, 96
    %v811 = vpop.permute.xlu0 %810
    %812 = vrot.lane.b32.xlu0 %v806, 64
    %v813 = vpop.permute.xlu0 %812
    %v814 = vmul.f32 %v811, %v724
    %v815 = vmul.f32 %v806, %v809
    %v816 = vadd.f32 %v814, %v815
    %v817 = vtanh.pop %v816
    %v818 = vmul.f32 %v813, %v817
    %819 = vst [vmem:[#allocation2 + $0x50] sm:$0xff] %v818
    %820 = vst [vmem:[#allocation2 + $0x28] sm:$0xff] %v818
    %v821 = vadd.f32 %v241, %v213
    %822 = vmatprep.subr.mxu0 0.0
    %823 = vmatpush1.msra.mxu0 %v266
    %824 = vmatprep.subr.mxu0 0.0
    %825 = vmatpush1.msra.mxu0 %v265
    %826 = vmatprep.subr.mxu0 0.0
    %827 = vmatpush1.msra.mxu0 %v264
    %828 = vmatprep.subr.mxu0 0.0
    %829 = vmatpush1.msra.mxu0 %v263
    %830 = vmatprep.subr.mxu0 0.0
    %831 = vmatpush1.msra.mxu0 %v262
    %832 = vmatprep.subr.mxu0 0.0
    %833 = vmatpush1.msra.mxu0 %v261
    %834 = vmatprep.subr.mxu0 0.0
    %835 = vmatpush1.msra.mxu0 %v260
    %836 = vmatprep.subr.mxu0 0.0
    %837 = vmatpush1.msra.mxu0 %v259
    %838 = vmatprep.subr.mxu0 0.0
    %839 = vmatpush1.msra.mxu0 %v258
    %840 = vmatprep.subr.mxu0 0.0
    %841 = vmatpush1.msra.mxu0 %v257
    %842 = vmatprep.subr.mxu0 0.0
    %843 = vmatpush1.msra.mxu0 %v256
    %844 = vmatprep.subr.mxu0 0.0
    %845 = vmatpush1.msra.mxu0 %v255
    %846 = vmatprep.subr.mxu0 0.0
    %847 = vmatpush1.msra.mxu0 %v254
    %848 = vmatprep.subr.mxu0 0.0
    %849 = vmatpush1.msra.mxu0 %v253
    %850 = vmatprep.subr.mxu0 0.0
    %851 = vmatpush1.msra.mxu0 %v252
    %852 = vmatprep.subr.mxu0 0.0
    %853 = vmatpush1.msra.mxu0 %v251
    %854 = vmatprep.subr.mxu0 0.0
    %855 = vmatpush2.msra.mxu0 0.0
    %856 = vmatprep.subr.mxu0 0.0
    %857 = vmatpush2.msra.mxu0 0.0
    %858 = vmatprep.subr.mxu0 0.0
    %859 = vmatpush2.msra.mxu0 0.0
    %860 = vmatprep.subr.mxu0 0.0
    %861 = vmatpush2.msra.mxu0 0.0
    %862 = vmatprep.subr.mxu0 0.0
    %863 = vmatpush2.msra.mxu0 0.0
    %864 = vmatprep.subr.mxu0 0.0
    %865 = vmatpush2.msra.mxu0 0.0
    %866 = vmatprep.subr.mxu0 0.0
    %867 = vmatpush2.msra.mxu0 0.0
    %868 = vmatprep.subr.mxu0 0.0
    %869 = vmatpush2.msra.mxu0 0.0
    %870 = vmatprep.subr.mxu0 0.0
    %871 = vmatpush2.msra.mxu0 0.0
    %872 = vmatprep.subr.mxu0 0.0
    %873 = vmatpush2.msra.mxu0 0.0
    %874 = vmatprep.subr.mxu0 0.0
    %875 = vmatpush2.msra.mxu0 0.0
    %876 = vmatprep.subr.mxu0 0.0
    %877 = vmatpush2.msra.mxu0 0.0
    %878 = vmatprep.subr.mxu0 0.0
    %879 = vmatpush2.msra.mxu0 0.0
    %880 = vmatprep.subr.mxu0 0.0
    %881 = vmatpush2.msra.mxu0 0.0
    %882 = vmatprep.subr.mxu0 0.0
    %883 = vmatpush2.msra.mxu0 0.0
    %884 = vmatprep.subr.mxu0 0.0
    %885 = vmatpush2.msra.mxu0 0.0
    %886 = vmatprep.mubr.f32.mxu0 0.0
    %887 = vmatmul.mubr.f32.gmra.mxu0 %v818
    %v888 = vpop.f32.mrf.mxu0
    %v889 = vadd.f32 0.0, %v888
    %v890 = vpop.f32.mrf.mxu0
    %891 = vdwg.mxu0
    %v892 = vadd.f32 %v821, %v889
    %v893 = vxor.u32 %v892, 2147483648
    %v894 = vmul.f32 %v893, 1.442695
    %v895 = vpow.pop %v894
    %v896 = vadd.f32 %v895, 1.0
    %v897 = vrcp.pop %v896
    %v898 = vmul.f32 1.0, %v897
    %899 = vrot.lane.b32.xlu0 %v892, 32
    %v900 = vpop.permute.xlu0 %899
    %v901 = vtanh.pop %v900
    %902 = vrot.lane.b32.xlu0 %v898, 96
    %v903 = vpop.permute.xlu0 %902
    %904 = vrot.lane.b32.xlu0 %v898, 64
    %v905 = vpop.permute.xlu0 %904
    %v906 = vmul.f32 %v903, %v816
    %v907 = vmul.f32 %v898, %v901
    %v908 = vadd.f32 %v906, %v907
    %v909 = vtanh.pop %v908
    %v910 = vmul.f32 %v905, %v909
    %911 = vst [vmem:[#allocation2 + $0x60] sm:$0xff] %v910
    %912 = vst [vmem:[#allocation2 + $0x18] sm:$0xff] %v910
    %v913 = vadd.f32 %v247, %v207
    %914 = vmatprep.subr.mxu0 0.0
    %915 = vmatpush1.msra.mxu0 %v266
    %916 = vmatprep.subr.mxu0 0.0
    %917 = vmatpush1.msra.mxu0 %v265
    %918 = vmatprep.subr.mxu0 0.0
    %919 = vmatpush1.msra.mxu0 %v264
    %920 = vmatprep.subr.mxu0 0.0
    %921 = vmatpush1.msra.mxu0 %v263
    %922 = vmatprep.subr.mxu0 0.0
    %923 = vmatpush1.msra.mxu0 %v262
    %924 = vmatprep.subr.mxu0 0.0
    %925 = vmatpush1.msra.mxu0 %v261
    %926 = vmatprep.subr.mxu0 0.0
    %927 = vmatpush1.msra.mxu0 %v260
    %928 = vmatprep.subr.mxu0 0.0
    %929 = vmatpush1.msra.mxu0 %v259
    %930 = vmatprep.subr.mxu0 0.0
    %931 = vmatpush1.msra.mxu0 %v258
    %932 = vmatprep.subr.mxu0 0.0
    %933 = vmatpush1.msra.mxu0 %v257
    %934 = vmatprep.subr.mxu0 0.0
    %935 = vmatpush1.msra.mxu0 %v256
    %936 = vmatprep.subr.mxu0 0.0
    %937 = vmatpush1.msra.mxu0 %v255
    %938 = vmatprep.subr.mxu0 0.0
    %939 = vmatpush1.msra.mxu0 %v254
    %940 = vmatprep.subr.mxu0 0.0
    %941 = vmatpush1.msra.mxu0 %v253
    %942 = vmatprep.subr.mxu0 0.0
    %943 = vmatpush1.msra.mxu0 %v252
    %944 = vmatprep.subr.mxu0 0.0
    %945 = vmatpush1.msra.mxu0 %v251
    %946 = vmatprep.subr.mxu0 0.0
    %947 = vmatpush2.msra.mxu0 0.0
    %948 = vmatprep.subr.mxu0 0.0
    %949 = vmatpush2.msra.mxu0 0.0
    %950 = vmatprep.subr.mxu0 0.0
    %951 = vmatpush2.msra.mxu0 0.0
    %952 = vmatprep.subr.mxu0 0.0
    %953 = vmatpush2.msra.mxu0 0.0
    %954 = vmatprep.subr.mxu0 0.0
    %955 = vmatpush2.msra.mxu0 0.0
    %956 = vmatprep.subr.mxu0 0.0
    %957 = vmatpush2.msra.mxu0 0.0
    %958 = vmatprep.subr.mxu0 0.0
    %959 = vmatpush2.msra.mxu0 0.0
    %960 = vmatprep.subr.mxu0 0.0
    %961 = vmatpush2.msra.mxu0 0.0
    %962 = vmatprep.subr.mxu0 0.0
    %963 = vmatpush2.msra.mxu0 0.0
    %964 = vmatprep.subr.mxu0 0.0
    %965 = vmatpush2.msra.mxu0 0.0
    %966 = vmatprep.subr.mxu0 0.0
    %967 = vmatpush2.msra.mxu0 0.0
    %968 = vmatprep.subr.mxu0 0.0
    %969 = vmatpush2.msra.mxu0 0.0
    %970 = vmatprep.subr.mxu0 0.0
    %971 = vmatpush2.msra.mxu0 0.0
    %972 = vmatprep.subr.mxu0 0.0
    %973 = vmatpush2.msra.mxu0 0.0
    %974 = vmatprep.subr.mxu0 0.0
    %975 = vmatpush2.msra.mxu0 0.0
    %976 = vmatprep.subr.mxu0 0.0
    %977 = vmatpush2.msra.mxu0 0.0
    %978 = vmatprep.mubr.f32.mxu0 0.0
    %979 = vmatmul.mubr.f32.gmra.mxu0 %v910
    %v980 = vpop.f32.mrf.mxu0
    %v981 = vadd.f32 0.0, %v980
    %v982 = vpop.f32.mrf.mxu0
    %983 = vdwg.mxu0
    %v984 = vadd.f32 %v913, %v981
    %v985 = vxor.u32 %v984, 2147483648
    %v986 = vmul.f32 %v985, 1.442695
    %v987 = vpow.pop %v986
    %v988 = vadd.f32 %v987, 1.0
    %v989 = vrcp.pop %v988
    %v990 = vmul.f32 1.0, %v989
    %991 = vrot.lane.b32.xlu0 %v984, 32
    %v992 = vpop.permute.xlu0 %991
    %v993 = vtanh.pop %v992
    %994 = vrot.lane.b32.xlu0 %v990, 96
    %v995 = vpop.permute.xlu0 %994
    %996 = vrot.lane.b32.xlu0 %v990, 64
    %v997 = vpop.permute.xlu0 %996
    %v998 = vmul.f32 %v995, %v908
    %v999 = vmul.f32 %v990, %v993
    %v1000 = vadd.f32 %v998, %v999
    %v1001 = vtanh.pop %v1000
    %v1002 = vmul.f32 %v997, %v1001
    %1003 = vst [vmem:[#allocation2 + $0x70] sm:$0xff] %v1002
    %1004 = vst [vmem:[#allocation2 + $0x8] sm:$0xff] %v1002
    %v1005 = vld [vmem:[#allocation2] sm:$0xff]
    %v1006 = vld [vmem:[#allocation2 + $0x8] sm:$0xff]
    %v1007 = vld [vmem:[#allocation2 + $0x10] sm:$0xff]
    %v1008 = vld [vmem:[#allocation2 + $0x18] sm:$0xff]
    %v1009 = vld [vmem:[#allocation2 + $0x20] sm:$0xff]
    %v1010 = vld [vmem:[#allocation2 + $0x28] sm:$0xff]
    %v1011 = vld [vmem:[#allocation2 + $0x30] sm:$0xff]
    %v1012 = vld [vmem:[#allocation2 + $0x38] sm:$0xff]
    %v1013 = vld [vmem:[#allocation2 + $0x40] sm:$0xff]
    %v1014 = vld [vmem:[#allocation2 + $0x48] sm:$0xff]
    %v1015 = vld [vmem:[#allocation2 + $0x50] sm:$0xff]
    %v1016 = vld [vmem:[#allocation2 + $0x58] sm:$0xff]
    %v1017 = vld [vmem:[#allocation2 + $0x60] sm:$0xff]
    %v1018 = vld [vmem:[#allocation2 + $0x68] sm:$0xff]
    %v1019 = vld [vmem:[#allocation2 + $0x70] sm:$0xff]
    %v1020 = vld [vmem:[#allocation2 + $0x78] sm:$0xff]
    %v1021 = vld [vmem:[%s5] sm:$0xff]
    %v1022 = vld [vmem:[%s5 + $0x8] sm:$0xff]
    %v1023 = vld [vmem:[%s5 + $0x10] sm:$0xff]
    %v1024 = vld [vmem:[%s5 + $0x18] sm:$0xff]
    %v1025 = vld [vmem:[%s5 + $0x20] sm:$0xff]
    %v1026 = vld [vmem:[%s5 + $0x28] sm:$0xff]
    %v1027 = vld [vmem:[%s5 + $0x30] sm:$0xff]
    %v1028 = vld [vmem:[%s5 + $0x38] sm:$0xff]
    %v1029 = vld [vmem:[%s5 + $0x40] sm:$0xff]
    %v1030 = vld [vmem:[%s5 + $0x48] sm:$0xff]
    %v1031 = vld [vmem:[%s5 + $0x50] sm:$0xff]
    %v1032 = vld [vmem:[%s5 + $0x58] sm:$0xff]
    %v1033 = vld [vmem:[%s5 + $0x60] sm:$0xff]
    %v1034 = vld [vmem:[%s5 + $0x68] sm:$0xff]
    %v1035 = vld [vmem:[%s5 + $0x70] sm:$0xff]
    %v1036 = vld [vmem:[%s5 + $0x78] sm:$0xff]
    %v1037 = vld [vmem:[%s5 + $0x80] sm:$0xff]
    %v1038 = vld [vmem:[%s5 + $0x88] sm:$0xff]
    %v1039 = vld [vmem:[%s5 + $0x90] sm:$0xff]
    %v1040 = vld [vmem:[%s5 + $0x98] sm:$0xff]
    %v1041 = vld [vmem:[%s5 + $0xa0] sm:$0xff]
    %v1042 = vld [vmem:[%s5 + $0xa8] sm:$0xff]
    %v1043 = vld [vmem:[%s5 + $0xb0] sm:$0xff]
    %v1044 = vld [vmem:[%s5 + $0xb8] sm:$0xff]
    %v1045 = vld [vmem:[%s5 + $0xc0] sm:$0xff]
    %v1046 = vld [vmem:[%s5 + $0xc8] sm:$0xff]
    %v1047 = vld [vmem:[%s5 + $0xd0] sm:$0xff]
    %v1048 = vld [vmem:[%s5 + $0xd8] sm:$0xff]
    %v1049 = vld [vmem:[%s5 + $0xe0] sm:$0xff]
    %v1050 = vld [vmem:[%s5 + $0xe8] sm:$0xff]
    %v1051 = vld [vmem:[%s5 + $0xf0] sm:$0xff]
    %v1052 = vld [vmem:[%s5 + $0xf8] sm:$0xff]
    %v1053 = vld [vmem:[%s6] sm:$0x1]
    %v1055 = vlaneseq
    %v1056 = vshrl.u32 %v1055, 7
    %v1057 = vsub.s32 0, %v1056
    %v1058 = vrot.slane %v1053, %v1057
    %1060 = vmatprep.subr.mxu0 0.0
    %1061 = vmatpush1.msra.mxu0 %v1036
    %1062 = vmatprep.subr.mxu0 0.0
    %1063 = vmatpush1.msra.mxu0 %v1035
    %1064 = vmatprep.subr.mxu0 0.0
    %1065 = vmatpush1.msra.mxu0 %v1034
    %1066 = vmatprep.subr.mxu0 0.0
    %1067 = vmatpush1.msra.mxu0 %v1033
    %1068 = vmatprep.subr.mxu0 0.0
    %1069 = vmatpush1.msra.mxu0 %v1032
    %1070 = vmatprep.subr.mxu0 0.0
    %1071 = vmatpush1.msra.mxu0 %v1031
    %1072 = vmatprep.subr.mxu0 0.0
    %1073 = vmatpush1.msra.mxu0 %v1030
    %1074 = vmatprep.subr.mxu0 0.0
    %1075 = vmatpush1.msra.mxu0 %v1029
    %1076 = vmatprep.subr.mxu0 0.0
    %1077 = vmatpush1.msra.mxu0 %v1028
    %1078 = vmatprep.subr.mxu0 0.0
    %1079 = vmatpush1.msra.mxu0 %v1027
    %1080 = vmatprep.subr.mxu0 0.0
    %1081 = vmatpush1.msra.mxu0 %v1026
    %1082 = vmatprep.subr.mxu0 0.0
    %1083 = vmatpush1.msra.mxu0 %v1025
    %1084 = vmatprep.subr.mxu0 0.0
    %1085 = vmatpush1.msra.mxu0 %v1024
    %1086 = vmatprep.subr.mxu0 0.0
    %1087 = vmatpush1.msra.mxu0 %v1023
    %1088 = vmatprep.subr.mxu0 0.0
    %1089 = vmatpush1.msra.mxu0 %v1022
    %1090 = vmatprep.subr.mxu0 0.0
    %1091 = vmatpush1.msra.mxu0 %v1021
    %1092 = vmatprep.subr.mxu0 0.0
    %1093 = vmatpush2.msra.mxu0 %v1052
    %1094 = vmatprep.subr.mxu0 0.0
    %1095 = vmatpush2.msra.mxu0 %v1051
    %1096 = vmatprep.subr.mxu0 0.0
    %1097 = vmatpush2.msra.mxu0 %v1050
    %1098 = vmatprep.subr.mxu0 0.0
    %1099 = vmatpush2.msra.mxu0 %v1049
    %1100 = vmatprep.subr.mxu0 0.0
    %1101 = vmatpush2.msra.mxu0 %v1048
    %1102 = vmatprep.subr.mxu0 0.0
    %1103 = vmatpush2.msra.mxu0 %v1047
    %1104 = vmatprep.subr.mxu0 0.0
    %1105 = vmatpush2.msra.mxu0 %v1046
    %1106 = vmatprep.subr.mxu0 0.0
    %1107 = vmatpush2.msra.mxu0 %v1045
    %1108 = vmatprep.subr.mxu0 0.0
    %1109 = vmatpush2.msra.mxu0 %v1044
    %1110 = vmatprep.subr.mxu0 0.0
    %1111 = vmatpush2.msra.mxu0 %v1043
    %1112 = vmatprep.subr.mxu0 0.0
    %1113 = vmatpush2.msra.mxu0 %v1042
    %1114 = vmatprep.subr.mxu0 0.0
    %1115 = vmatpush2.msra.mxu0 %v1041
    %1116 = vmatprep.subr.mxu0 0.0
    %1117 = vmatpush2.msra.mxu0 %v1040
    %1118 = vmatprep.subr.mxu0 0.0
    %1119 = vmatpush2.msra.mxu0 %v1039
    %1120 = vmatprep.subr.mxu0 0.0
    %1121 = vmatpush2.msra.mxu0 %v1038
    %1122 = vmatprep.subr.mxu0 0.0
    %1123 = vmatpush2.msra.mxu0 %v1037
    %1124 = vmatprep.mubr.f32.mxu0 %v1006
    %1125 = vmatmul.mubr.f32.gmra.mxu0 %v1005
    %v1126 = vpop.f32.mrf.mxu0
    %v1127 = vadd.f32 %v1058, %v1126
    %v1128 = vpop.f32.mrf.mxu0
    %1129 = vmatprep.mubr.f32.mxu0 %v1008
    %1130 = vmatmul.mubr.f32.gmra.mxu0 %v1007
    %v1131 = vpop.f32.mrf.mxu0
    %v1132 = vadd.f32 %v1058, %v1131
    %v1133 = vpop.f32.mrf.mxu0
    %1134 = vmatprep.mubr.f32.mxu0 %v1010
    %1135 = vmatmul.mubr.f32.gmra.mxu0 %v1009
    %v1136 = vpop.f32.mrf.mxu0
    %v1137 = vadd.f32 %v1058, %v1136
    %v1138 = vpop.f32.mrf.mxu0
    %1139 = vmatprep.mubr.f32.mxu0 %v1012
    %1140 = vmatmul.mubr.f32.gmra.mxu0 %v1011
    %v1141 = vpop.f32.mrf.mxu0
    %v1142 = vadd.f32 %v1058, %v1141
    %v1143 = vpop.f32.mrf.mxu0
    %1144 = vmatprep.mubr.f32.mxu0 %v1014
    %1145 = vmatmul.mubr.f32.gmra.mxu0 %v1013
    %v1146 = vpop.f32.mrf.mxu0
    %v1147 = vadd.f32 %v1058, %v1146
    %v1148 = vpop.f32.mrf.mxu0
    %1149 = vmatprep.mubr.f32.mxu0 %v1016
    %1150 = vmatmul.mubr.f32.gmra.mxu0 %v1015
    %v1151 = vpop.f32.mrf.mxu0
    %v1152 = vadd.f32 %v1058, %v1151
    %v1153 = vpop.f32.mrf.mxu0
    %1154 = vmatprep.mubr.f32.mxu0 %v1018
    %1155 = vmatmul.mubr.f32.gmra.mxu0 %v1017
    %v1156 = vpop.f32.mrf.mxu0
    %v1157 = vadd.f32 %v1058, %v1156
    %v1158 = vpop.f32.mrf.mxu0
    %1159 = vmatprep.mubr.f32.mxu0 %v1020
    %1160 = vmatmul.mubr.f32.gmra.mxu0 %v1019
    %v1161 = vpop.f32.mrf.mxu0
    %v1162 = vadd.f32 %v1058, %v1161
    %v1163 = vpop.f32.mrf.mxu0
    %1164 = vdwg.mxu0
    %v1165 = vld [vmem:[%s9] sm:$0x1f]
    %v1166 = vld [vmem:[%s10] sm:$0x1]
    %v1167 = vld [vmem:[%s11] sm:$0x1]
    %v1168 = vld [vmem:[%s8] sm:$0xff]
    %v1169 = vld [vmem:[%s8 + $0x8] sm:$0xff]
    %v1170 = vld [vmem:[%s8 + $0x10] sm:$0xff]
    %v1171 = vld [vmem:[%s8 + $0x18] sm:$0xff]
    %v1172 = vld [vmem:[%s8 + $0x20] sm:$0xff]
    %v1173 = vld [vmem:[%s8 + $0x28] sm:$0xff]
    %v1174 = vld [vmem:[%s8 + $0x30] sm:$0xff]
    %v1175 = vld [vmem:[%s8 + $0x38] sm:$0xff]
    %v1176 = vld [vmem:[%s7] sm:$0xff]
    %v1177 = vld [vmem:[%s7 + $0x8] sm:$0xff]
    %v1178 = vld [vmem:[%s7 + $0x10] sm:$0xff]
    %v1179 = vld [vmem:[%s7 + $0x18] sm:$0xff]
    %v1180 = vld [vmem:[%s7 + $0x20] sm:$0xff]
    %v1181 = vld [vmem:[%s7 + $0x28] sm:$0xff]
    %v1182 = vld [vmem:[%s7 + $0x30] sm:$0xff]
    %v1183 = vld [vmem:[%s7 + $0x38] sm:$0xff]
    %1184 = vset.pattern.permute.xlu0 0
    %1185 = vperm.xlu0 %1184, %v1176
    %v1186 = vpop.permute.xlu0 %1185
    %1187 = vset.pattern.permute.xlu0 0
    %1188 = vperm.xlu0 %1187, %v1177
    %v1189 = vpop.permute.xlu0 %1188
    %1190 = vset.pattern.permute.xlu0 0
    %1191 = vperm.xlu0 %1190, %v1178
    %v1192 = vpop.permute.xlu0 %1191
    %1193 = vset.pattern.permute.xlu0 0
    %1194 = vperm.xlu0 %1193, %v1179
    %v1195 = vpop.permute.xlu0 %1194
    %1196 = vset.pattern.permute.xlu0 0
    %1197 = vperm.xlu0 %1196, %v1180
    %v1198 = vpop.permute.xlu0 %1197
    %1199 = vset.pattern.permute.xlu0 0
    %1200 = vperm.xlu0 %1199, %v1181
    %v1201 = vpop.permute.xlu0 %1200
    %1202 = vset.pattern.permute.xlu0 0
    %1203 = vperm.xlu0 %1202, %v1182
    %v1204 = vpop.permute.xlu0 %1203
    %1205 = vset.pattern.permute.xlu0 0
    %1206 = vperm.xlu0 %1205, %v1183
    %v1207 = vpop.permute.xlu0 %1206
    %vm1208 = vcmp.eq.s32.totalorder %v1186, %v51
    %vm1209 = vcmp.eq.s32.totalorder %v1189, %v51
    %vm1210 = vcmp.eq.s32.totalorder %v1192, %v51
    %vm1211 = vcmp.eq.s32.totalorder %v1195, %v51
    %vm1212 = vcmp.eq.s32.totalorder %v1198, %v51
    %vm1213 = vcmp.eq.s32.totalorder %v1201, %v51
    %vm1214 = vcmp.eq.s32.totalorder %v1204, %v51
    %vm1215 = vcmp.eq.s32.totalorder %v1207, %v51
    %v1216 = vsel %vm1208, 1, 0
    %v1217 = vsel %vm1209, 1, 0
    %v1218 = vsel %vm1210, 1, 0
    %v1219 = vsel %vm1211, 1, 0
    %v1220 = vsel %vm1212, 1, 0
    %v1221 = vsel %vm1213, 1, 0
    %v1222 = vsel %vm1214, 1, 0
    %v1223 = vsel %vm1215, 1, 0
    %v1224 = vcvt.s32.f32 %v1216
    %v1225 = vcvt.s32.f32 %v1217
    %v1226 = vcvt.s32.f32 %v1218
    %v1227 = vcvt.s32.f32 %v1219
    %v1228 = vcvt.s32.f32 %v1220
    %v1229 = vcvt.s32.f32 %v1221
    %v1230 = vcvt.s32.f32 %v1222
    %v1231 = vcvt.s32.f32 %v1223
    %v1232 = vmul.f32 %v1127, %v1224
    %v1233 = vmul.f32 %v1132, %v1225
    %v1234 = vmul.f32 %v1137, %v1226
    %v1235 = vmul.f32 %v1142, %v1227
    %v1236 = vmul.f32 %v1147, %v1228
    %v1237 = vmul.f32 %v1152, %v1229
    %v1238 = vmul.f32 %v1157, %v1230
    %v1239 = vmul.f32 %v1162, %v1231
    %1241 = vset.pattern.permute.xlu0 0
    %1242 = vperm.xlu0 %1241, %v1168
    %v1243 = vpop.permute.xlu0 %1242
    %1246 = vset.pattern.permute.xlu0 0
    %1247 = vperm.xlu0 %1246, %v1169
    %v1248 = vpop.permute.xlu0 %1247
    %1251 = vset.pattern.permute.xlu0 0
    %1252 = vperm.xlu0 %1251, %v1170
    %v1253 = vpop.permute.xlu0 %1252
    %1256 = vset.pattern.permute.xlu0 0
    %1257 = vperm.xlu0 %1256, %v1171
    %v1258 = vpop.permute.xlu0 %1257
    %1261 = vset.pattern.permute.xlu0 0
    %1262 = vperm.xlu0 %1261, %v1172
    %v1263 = vpop.permute.xlu0 %1262
    %1266 = vset.pattern.permute.xlu0 0
    %1267 = vperm.xlu0 %1266, %v1173
    %v1268 = vpop.permute.xlu0 %1267
    %1271 = vset.pattern.permute.xlu0 0
    %1272 = vperm.xlu0 %1271, %v1174
    %v1273 = vpop.permute.xlu0 %1272
    %1276 = vset.pattern.permute.xlu0 0
    %1277 = vperm.xlu0 %1276, %v1175
    %v1278 = vpop.permute.xlu0 %1277
    %v1280 = vmul.f32 %v1232, %v1243
    %v1281 = vmul.f32 %v1233, %v1248
    %v1282 = vmul.f32 %v1234, %v1253
    %v1283 = vmul.f32 %v1235, %v1258
    %v1284 = vmul.f32 %v1236, %v1263
    %v1285 = vmul.f32 %v1237, %v1268
    %v1286 = vmul.f32 %v1238, %v1273
    %v1287 = vmul.f32 %v1239, %v1278
    %vm1288 = vcmask 39936
    %v1289 = vsel %vm1288, %v1280, 0.0
    %v1290 = vsel %vm1288, %v1281, 0.0
    %v1291 = vadd.f32 %v1289, %v1290
    %v1292 = vsel %vm1288, %v1282, 0.0
    %v1293 = vadd.f32 %v1291, %v1292
    %v1294 = vsel %vm1288, %v1283, 0.0
    %v1295 = vadd.f32 %v1293, %v1294
    %v1296 = vsel %vm1288, %v1284, 0.0
    %v1297 = vadd.f32 %v1295, %v1296
    %v1298 = vsel %vm1288, %v1285, 0.0
    %v1299 = vadd.f32 %v1297, %v1298
    %v1300 = vsel %vm1288, %v1286, 0.0
    %v1301 = vadd.f32 %v1299, %v1300
    %v1302 = vsel %vm1288, %v1287, 0.0
    %v1303 = vadd.f32 %v1301, %v1302
    %v1304 = vsel %vm1288, %v1303, 0.0
    %1305 = vadd.xlane.f32.xlu0 %v1304
    %v1306 = vpop.xlane.xlu0 %1305
    %v1308 = vsel %vm1288, %v1224, 0
    %v1311 = vsel %vm1288, %v1225, 0
    %v1314 = vsel %vm1288, %v1226, 0
    %v1317 = vsel %vm1288, %v1227, 0
    %v1320 = vsel %vm1288, %v1228, 0
    %v1323 = vsel %vm1288, %v1229, 0
    %v1326 = vsel %vm1288, %v1230, 0
    %vm1328 = vcmask 1044480
    %v1330 = vsel %vm1328, %v1165, 0
    %1332 = vmatprep.subr.mxu0 0.0
    %1333 = vmatpush1.msra.mxu0 0.0
    %1334 = vmatprep.subr.mxu0 0.0
    %1335 = vmatpush1.msra.mxu0 0.0
    %1336 = vmatprep.subr.mxu0 0.0
    %1337 = vmatpush1.msra.mxu0 0.0
    %1338 = vmatprep.subr.mxu0 0.0
    %1339 = vmatpush1.msra.mxu0 0.0
    %1340 = vmatprep.subr.mxu0 0.0
    %1341 = vmatpush1.msra.mxu0 0.0
    %1342 = vmatprep.subr.mxu0 0.0
    %1343 = vmatpush1.msra.mxu0 0.0
    %1344 = vmatprep.subr.mxu0 0.0
    %1345 = vmatpush1.msra.mxu0 0.0
    %1346 = vmatprep.subr.mxu0 0.0
    %1347 = vmatpush1.msra.mxu0 0.0
    %1348 = vmatprep.subr.mxu0 0.0
    %1349 = vmatpush1.msra.mxu0 0.0
    %1350 = vmatprep.subr.mxu0 0.0
    %1351 = vmatpush1.msra.mxu0 0.0
    %1352 = vmatprep.subr.mxu0 0.0
    %1353 = vmatpush1.msra.mxu0 0.0
    %1354 = vmatprep.subr.mxu0 0.0
    %1355 = vmatpush1.msra.mxu0 0.0
    %1356 = vmatprep.subr.mxu0 0.0
    %1357 = vmatpush1.msra.mxu0 0.0
    %1358 = vmatprep.subr.mxu0 0.0
    %1359 = vmatpush1.msra.mxu0 0.0
    %1360 = vmatprep.subr.mxu0 0.0
    %1361 = vmatpush1.msra.mxu0 0.0
    %1362 = vmatprep.subr.mxu0 0.0
    %1363 = vmatpush1.msra.mxu0 %v1330
    %1364 = vmatprep.subr.mxu0 0.0
    %1365 = vmatpush2.msra.mxu0 0.0
    %1366 = vmatprep.subr.mxu0 0.0
    %1367 = vmatpush2.msra.mxu0 0.0
    %1368 = vmatprep.subr.mxu0 0.0
    %1369 = vmatpush2.msra.mxu0 0.0
    %1370 = vmatprep.subr.mxu0 0.0
    %1371 = vmatpush2.msra.mxu0 0.0
    %1372 = vmatprep.subr.mxu0 0.0
    %1373 = vmatpush2.msra.mxu0 0.0
    %1374 = vmatprep.subr.mxu0 0.0
    %1375 = vmatpush2.msra.mxu0 0.0
    %1376 = vmatprep.subr.mxu0 0.0
    %1377 = vmatpush2.msra.mxu0 0.0
    %1378 = vmatprep.subr.mxu0 0.0
    %1379 = vmatpush2.msra.mxu0 0.0
    %1380 = vmatprep.subr.mxu0 0.0
    %1381 = vmatpush2.msra.mxu0 0.0
    %1382 = vmatprep.subr.mxu0 0.0
    %1383 = vmatpush2.msra.mxu0 0.0
    %1384 = vmatprep.subr.mxu0 0.0
    %1385 = vmatpush2.msra.mxu0 0.0
    %1386 = vmatprep.subr.mxu0 0.0
    %1387 = vmatpush2.msra.mxu0 0.0
    %1388 = vmatprep.subr.mxu0 0.0
    %1389 = vmatpush2.msra.mxu0 0.0
    %1390 = vmatprep.subr.mxu0 0.0
    %1391 = vmatpush2.msra.mxu0 0.0
    %1392 = vmatprep.subr.mxu0 0.0
    %1393 = vmatpush2.msra.mxu0 0.0
    %1394 = vmatprep.subr.mxu0 0.0
    %1395 = vmatpush2.msra.mxu0 0.0
    %1396 = vmatprep.mubr.f32.mxu0 0.0
    %1397 = vmatmul.mubr.f32.gmra.mxu0 %v1308
    %v1398 = vpop.f32.mrf.mxu0
    %v1399 = vadd.f32 0.0, %v1398
    %v1400 = vpop.f32.mrf.mxu0
    %1401 = vmatprep.mubr.f32.mxu0 0.0
    %1402 = vmatmul.mubr.f32.gmra.mxu0 %v1311
    %v1403 = vpop.f32.mrf.mxu0
    %v1404 = vadd.f32 0.0, %v1403
    %v1405 = vpop.f32.mrf.mxu0
    %1406 = vmatprep.mubr.f32.mxu0 0.0
    %1407 = vmatmul.mubr.f32.gmra.mxu0 %v1314
    %v1408 = vpop.f32.mrf.mxu0
    %v1409 = vadd.f32 0.0, %v1408
    %v1410 = vpop.f32.mrf.mxu0
    %1411 = vmatprep.mubr.f32.mxu0 0.0
    %1412 = vmatmul.mubr.f32.gmra.mxu0 %v1317
    %v1413 = vpop.f32.mrf.mxu0
    %v1414 = vadd.f32 0.0, %v1413
    %v1415 = vpop.f32.mrf.mxu0
    %1416 = vmatprep.mubr.f32.mxu0 0.0
    %1417 = vmatmul.mubr.f32.gmra.mxu0 %v1320
    %v1418 = vpop.f32.mrf.mxu0
    %v1419 = vadd.f32 0.0, %v1418
    %v1420 = vpop.f32.mrf.mxu0
    %1421 = vmatprep.mubr.f32.mxu0 0.0
    %1422 = vmatmul.mubr.f32.gmra.mxu0 %v1323
    %v1423 = vpop.f32.mrf.mxu0
    %v1424 = vadd.f32 0.0, %v1423
    %v1425 = vpop.f32.mrf.mxu0
    %1426 = vmatprep.mubr.f32.mxu0 0.0
    %1427 = vmatmul.mubr.f32.gmra.mxu0 %v1326
    %v1428 = vpop.f32.mrf.mxu0
    %v1429 = vadd.f32 0.0, %v1428
    %v1430 = vpop.f32.mrf.mxu0
    %1431 = vdwg.mxu0
    %v1432 = vmul.f32 %v1399, %v1225
    %v1433 = vmul.f32 %v1404, %v1226
    %v1434 = vmul.f32 %v1409, %v1227
    %v1435 = vmul.f32 %v1414, %v1228
    %v1436 = vmul.f32 %v1419, %v1229
    %v1437 = vmul.f32 %v1424, %v1230
    %v1438 = vmul.f32 %v1429, %v1231
    %v1439 = vmul.f32 %v1432, %v1248
    %v1440 = vmul.f32 %v1433, %v1253
    %v1441 = vmul.f32 %v1434, %v1258
    %v1442 = vmul.f32 %v1435, %v1263
    %v1443 = vmul.f32 %v1436, %v1268
    %v1444 = vmul.f32 %v1437, %v1273
    %v1445 = vmul.f32 %v1438, %v1278
    %v1446 = vsel %vm1288, %v1439, 0.0
    %v1447 = vsel %vm1288, %v1440, 0.0
    %v1448 = vadd.f32 %v1446, %v1447
    %v1449 = vsel %vm1288, %v1441, 0.0
    %v1450 = vadd.f32 %v1448, %v1449
    %v1451 = vsel %vm1288, %v1442, 0.0
    %v1452 = vadd.f32 %v1450, %v1451
    %v1453 = vsel %vm1288, %v1443, 0.0
    %v1454 = vadd.f32 %v1452, %v1453
    %v1455 = vsel %vm1288, %v1444, 0.0
    %v1456 = vadd.f32 %v1454, %v1455
    %v1457 = vsel %vm1288, %v1445, 0.0
    %v1458 = vadd.f32 %v1456, %v1457
    %v1459 = vsel %vm1288, %v1458, 0.0
    %1460 = vadd.xlane.f32.xlu0 %v1459
    %v1461 = vpop.xlane.xlu0 %1460
    %v1462 = vsub.f32 1.0, %v1169
    %v1463 = vsub.f32 1.0, %v1170
    %v1464 = vsub.f32 1.0, %v1171
    %v1465 = vsub.f32 1.0, %v1172
    %v1466 = vsub.f32 1.0, %v1173
    %v1467 = vsub.f32 1.0, %v1174
    %v1468 = vsub.f32 1.0, %v1175
    %v1469 = vmul.f32 %v1168, %v1462
    %v1470 = vmul.f32 %v1169, %v1463
    %v1471 = vmul.f32 %v1170, %v1464
    %v1472 = vmul.f32 %v1171, %v1465
    %v1473 = vmul.f32 %v1172, %v1466
    %v1474 = vmul.f32 %v1173, %v1467
    %v1475 = vmul.f32 %v1174, %v1468
    %1477 = vset.pattern.permute.xlu0 0
    %1478 = vperm.xlu0 %1477, %v1469
    %v1479 = vpop.permute.xlu0 %1478
    %1482 = vset.pattern.permute.xlu0 0
    %1483 = vperm.xlu0 %1482, %v1470
    %v1484 = vpop.permute.xlu0 %1483
    %1487 = vset.pattern.permute.xlu0 0
    %1488 = vperm.xlu0 %1487, %v1471
    %v1489 = vpop.permute.xlu0 %1488
    %1492 = vset.pattern.permute.xlu0 0
    %1493 = vperm.xlu0 %1492, %v1472
    %v1494 = vpop.permute.xlu0 %1493
    %1497 = vset.pattern.permute.xlu0 0
    %1498 = vperm.xlu0 %1497, %v1473
    %v1499 = vpop.permute.xlu0 %1498
    %1502 = vset.pattern.permute.xlu0 0
    %1503 = vperm.xlu0 %1502, %v1474
    %v1504 = vpop.permute.xlu0 %1503
    %1507 = vset.pattern.permute.xlu0 0
    %1508 = vperm.xlu0 %1507, %v1475
    %v1509 = vpop.permute.xlu0 %1508
    %v1511 = vmul.f32 %v1224, %v1479
    %v1512 = vmul.f32 %v1225, %v1484
    %v1513 = vmul.f32 %v1226, %v1489
    %v1514 = vmul.f32 %v1227, %v1494
    %v1515 = vmul.f32 %v1228, %v1499
    %v1516 = vmul.f32 %v1229, %v1504
    %v1517 = vmul.f32 %v1230, %v1509
    %v1518 = vmul.f32 %v1231, %v1278
    %v1519 = vsel %vm1288, %v1511, 0.0
    %v1520 = vsel %vm1288, %v1512, 0.0
    %v1521 = vadd.f32 %v1519, %v1520
    %v1522 = vsel %vm1288, %v1513, 0.0
    %v1523 = vadd.f32 %v1521, %v1522
    %v1524 = vsel %vm1288, %v1514, 0.0
    %v1525 = vadd.f32 %v1523, %v1524
    %v1526 = vsel %vm1288, %v1515, 0.0
    %v1527 = vadd.f32 %v1525, %v1526
    %v1528 = vsel %vm1288, %v1516, 0.0
    %v1529 = vadd.f32 %v1527, %v1528
    %v1530 = vsel %vm1288, %v1517, 0.0
    %v1531 = vadd.f32 %v1529, %v1530
    %v1532 = vsel %vm1288, %v1518, 0.0
    %v1533 = vadd.f32 %v1531, %v1532
    %v1535 = vlaneseq
    %v1536 = vshrl.u32 %v1535, 7
    %v1537 = vsub.s32 0, %v1536
    %v1538 = vrot.slane %v1166, %v1537
    %v1540 = vmul.f32 %v1538, %v1224
    %v1541 = vsel %vm1288, %v1540, 0.0
    %1542 = vadd.xlane.f32.xlu0 %v1541
    %v1543 = vpop.xlane.xlu0 %1542
    %v1545 = vlaneseq
    %v1546 = vshrl.u32 %v1545, 7
    %v1547 = vsub.s32 0, %v1546
    %v1548 = vrot.slane %v1167, %v1547
    %v1550 = vmul.f32 %v1548, %v1533
    %v1551 = vsel %vm1288, %v1550, 0.0
    %1552 = vadd.xlane.f32.xlu0 %v1551
    %v1553 = vpop.xlane.xlu0 %1552
    %v1554 = vadd.f32 %v1543, %v1306
    %v1555 = vadd.f32 %v1554, %v1461
    %v1556 = vadd.f32 %v1555, %v1553
    %v1557 = vmul.f32 %v1165, 1.442695
    %v1558 = vpow.pop %v1557
    %v1559 = vadd.f32 %v1538, %v1127
    %v1560 = vsel %vm1288, %v1559, -inf
    %1561 = vmax.xlane.f32.xlu0 %v1560
    %v1562 = vpop.xlane.xlu0 %1561
    %v1563 = vsub.f32 %v1559, %v1562
    %v1564 = vmul.f32 %v1563, 1.442695
    %v1565 = vpow.pop %v1564
    %v1567 = vsel %vm1288, %v1565, 0
    %v1570 = vsel %vm1328, %v1558, 0
    %1572 = vmatprep.subr.mxu0 0.0
    %1573 = vmatpush1.msra.mxu0 0.0
    %1574 = vmatprep.subr.mxu0 0.0
    %1575 = vmatpush1.msra.mxu0 0.0
    %1576 = vmatprep.subr.mxu0 0.0
    %1577 = vmatpush1.msra.mxu0 0.0
    %1578 = vmatprep.subr.mxu0 0.0
    %1579 = vmatpush1.msra.mxu0 0.0
    %1580 = vmatprep.subr.mxu0 0.0
    %1581 = vmatpush1.msra.mxu0 0.0
    %1582 = vmatprep.subr.mxu0 0.0
    %1583 = vmatpush1.msra.mxu0 0.0
    %1584 = vmatprep.subr.mxu0 0.0
    %1585 = vmatpush1.msra.mxu0 0.0
    %1586 = vmatprep.subr.mxu0 0.0
    %1587 = vmatpush1.msra.mxu0 0.0
    %1588 = vmatprep.subr.mxu0 0.0
    %1589 = vmatpush1.msra.mxu0 0.0
    %1590 = vmatprep.subr.mxu0 0.0
    %1591 = vmatpush1.msra.mxu0 0.0
    %1592 = vmatprep.subr.mxu0 0.0
    %1593 = vmatpush1.msra.mxu0 0.0
    %1594 = vmatprep.subr.mxu0 0.0
    %1595 = vmatpush1.msra.mxu0 0.0
    %1596 = vmatprep.subr.mxu0 0.0
    %1597 = vmatpush1.msra.mxu0 0.0
    %1598 = vmatprep.subr.mxu0 0.0
    %1599 = vmatpush1.msra.mxu0 0.0
    %1600 = vmatprep.subr.mxu0 0.0
    %1601 = vmatpush1.msra.mxu0 0.0
    %1602 = vmatprep.subr.mxu0 0.0
    %1603 = vmatpush1.msra.mxu0 %v1570
    %1604 = vmatprep.subr.mxu0 0.0
    %1605 = vmatpush2.msra.mxu0 0.0
    %1606 = vmatprep.subr.mxu0 0.0
    %1607 = vmatpush2.msra.mxu0 0.0
    %1608 = vmatprep.subr.mxu0 0.0
    %1609 = vmatpush2.msra.mxu0 0.0
    %1610 = vmatprep.subr.mxu0 0.0
    %1611 = vmatpush2.msra.mxu0 0.0
    %1612 = vmatprep.subr.mxu0 0.0
    %1613 = vmatpush2.msra.mxu0 0.0
    %1614 = vmatprep.subr.mxu0 0.0
    %1615 = vmatpush2.msra.mxu0 0.0
    %1616 = vmatprep.subr.mxu0 0.0
    %1617 = vmatpush2.msra.mxu0 0.0
    %1618 = vmatprep.subr.mxu0 0.0
    %1619 = vmatpush2.msra.mxu0 0.0
    %1620 = vmatprep.subr.mxu0 0.0
    %1621 = vmatpush2.msra.mxu0 0.0
    %1622 = vmatprep.subr.mxu0 0.0
    %1623 = vmatpush2.msra.mxu0 0.0
    %1624 = vmatprep.subr.mxu0 0.0
    %1625 = vmatpush2.msra.mxu0 0.0
    %1626 = vmatprep.subr.mxu0 0.0
    %1627 = vmatpush2.msra.mxu0 0.0
    %1628 = vmatprep.subr.mxu0 0.0
    %1629 = vmatpush2.msra.mxu0 0.0
    %1630 = vmatprep.subr.mxu0 0.0
    %1631 = vmatpush2.msra.mxu0 0.0
    %1632 = vmatprep.subr.mxu0 0.0
    %1633 = vmatpush2.msra.mxu0 0.0
    %1634 = vmatprep.subr.mxu0 0.0
    %1635 = vmatpush2.msra.mxu0 0.0
    %1636 = vmatprep.mubr.f32.mxu0 0.0
    %1637 = vmatmul.mubr.f32.gmra.mxu0 %v1567
    %v1638 = vpop.f32.mrf.mxu0
    %v1639 = vadd.f32 0.0, %v1638
    %v1640 = vpop.f32.mrf.mxu0
    %1641 = vdwg.mxu0
    %v1642 = vadd.f32 %v1132, %v1562
    %v1643 = vlog2.pop %v1639
    %v1644 = vmul.f32 %v1643, 0.6931472
    %v1645 = vadd.f32 %v1642, %v1644
    %v1646 = vmul.f32 %v1645, %v1248
    %1648 = vset.pattern.permute.xlu0 0
    %1649 = vperm.xlu0 %1648, %v1462
    %v1650 = vpop.permute.xlu0 %1649
    %v1652 = vmul.f32 %v1559, %v1650
    %v1653 = vadd.f32 %v1646, %v1652
    %v1654 = vsel %vm1288, %v1653, -inf
    %1655 = vmax.xlane.f32.xlu0 %v1654
    %v1656 = vpop.xlane.xlu0 %1655
    %v1657 = vsub.f32 %v1653, %v1656
    %v1658 = vmul.f32 %v1657, 1.442695
    %v1659 = vpow.pop %v1658
    %v1661 = vsel %vm1288, %v1659, 0
    %1663 = vmatprep.subr.mxu0 0.0
    %1664 = vmatpush1.msra.mxu0 0.0
    %1665 = vmatprep.subr.mxu0 0.0
    %1666 = vmatpush1.msra.mxu0 0.0
    %1667 = vmatprep.subr.mxu0 0.0
    %1668 = vmatpush1.msra.mxu0 0.0
    %1669 = vmatprep.subr.mxu0 0.0
    %1670 = vmatpush1.msra.mxu0 0.0
    %1671 = vmatprep.subr.mxu0 0.0
    %1672 = vmatpush1.msra.mxu0 0.0
    %1673 = vmatprep.subr.mxu0 0.0
    %1674 = vmatpush1.msra.mxu0 0.0
    %1675 = vmatprep.subr.mxu0 0.0
    %1676 = vmatpush1.msra.mxu0 0.0
    %1677 = vmatprep.subr.mxu0 0.0
    %1678 = vmatpush1.msra.mxu0 0.0
    %1679 = vmatprep.subr.mxu0 0.0
    %1680 = vmatpush1.msra.mxu0 0.0
    %1681 = vmatprep.subr.mxu0 0.0
    %1682 = vmatpush1.msra.mxu0 0.0
    %1683 = vmatprep.subr.mxu0 0.0
    %1684 = vmatpush1.msra.mxu0 0.0
    %1685 = vmatprep.subr.mxu0 0.0
    %1686 = vmatpush1.msra.mxu0 0.0
    %1687 = vmatprep.subr.mxu0 0.0
    %1688 = vmatpush1.msra.mxu0 0.0
    %1689 = vmatprep.subr.mxu0 0.0
    %1690 = vmatpush1.msra.mxu0 0.0
    %1691 = vmatprep.subr.mxu0 0.0
    %1692 = vmatpush1.msra.mxu0 0.0
    %1693 = vmatprep.subr.mxu0 0.0
    %1694 = vmatpush1.msra.mxu0 %v1570
    %1695 = vmatprep.subr.mxu0 0.0
    %1696 = vmatpush2.msra.mxu0 0.0
    %1697 = vmatprep.subr.mxu0 0.0
    %1698 = vmatpush2.msra.mxu0 0.0
    %1699 = vmatprep.subr.mxu0 0.0
    %1700 = vmatpush2.msra.mxu0 0.0
    %1701 = vmatprep.subr.mxu0 0.0
    %1702 = vmatpush2.msra.mxu0 0.0
    %1703 = vmatprep.subr.mxu0 0.0
    %1704 = vmatpush2.msra.mxu0 0.0
    %1705 = vmatprep.subr.mxu0 0.0
    %1706 = vmatpush2.msra.mxu0 0.0
    %1707 = vmatprep.subr.mxu0 0.0
    %1708 = vmatpush2.msra.mxu0 0.0
    %1709 = vmatprep.subr.mxu0 0.0
    %1710 = vmatpush2.msra.mxu0 0.0
    %1711 = vmatprep.subr.mxu0 0.0
    %1712 = vmatpush2.msra.mxu0 0.0
    %1713 = vmatprep.subr.mxu0 0.0
    %1714 = vmatpush2.msra.mxu0 0.0
    %1715 = vmatprep.subr.mxu0 0.0
    %1716 = vmatpush2.msra.mxu0 0.0
    %1717 = vmatprep.subr.mxu0 0.0
    %1718 = vmatpush2.msra.mxu0 0.0
    %1719 = vmatprep.subr.mxu0 0.0
    %1720 = vmatpush2.msra.mxu0 0.0
    %1721 = vmatprep.subr.mxu0 0.0
    %1722 = vmatpush2.msra.mxu0 0.0
    %1723 = vmatprep.subr.mxu0 0.0
    %1724 = vmatpush2.msra.mxu0 0.0
    %1725 = vmatprep.subr.mxu0 0.0
    %1726 = vmatpush2.msra.mxu0 0.0
    %1727 = vmatprep.mubr.f32.mxu0 0.0
    %1728 = vmatmul.mubr.f32.gmra.mxu0 %v1661
    %v1729 = vpop.f32.mrf.mxu0
    %v1730 = vadd.f32 0.0, %v1729
    %v1731 = vpop.f32.mrf.mxu0
    %1732 = vdwg.mxu0
    %v1733 = vadd.f32 %v1137, %v1656
    %v1734 = vlog2.pop %v1730
    %v1735 = vmul.f32 %v1734, 0.6931472
    %v1736 = vadd.f32 %v1733, %v1735
    %v1737 = vmul.f32 %v1736, %v1253
    %1739 = vset.pattern.permute.xlu0 0
    %1740 = vperm.xlu0 %1739, %v1463
    %v1741 = vpop.permute.xlu0 %1740
    %v1743 = vmul.f32 %v1653, %v1741
    %v1744 = vadd.f32 %v1737, %v1743
    %v1745 = vsel %vm1288, %v1744, -inf
    %1746 = vmax.xlane.f32.xlu0 %v1745
    %v1747 = vpop.xlane.xlu0 %1746
    %v1748 = vsub.f32 %v1744, %v1747
    %v1749 = vmul.f32 %v1748, 1.442695
    %v1750 = vpow.pop %v1749
    %v1752 = vsel %vm1288, %v1750, 0
    %1754 = vmatprep.subr.mxu0 0.0
    %1755 = vmatpush1.msra.mxu0 0.0
    %1756 = vmatprep.subr.mxu0 0.0
    %1757 = vmatpush1.msra.mxu0 0.0
    %1758 = vmatprep.subr.mxu0 0.0
    %1759 = vmatpush1.msra.mxu0 0.0
    %1760 = vmatprep.subr.mxu0 0.0
    %1761 = vmatpush1.msra.mxu0 0.0
    %1762 = vmatprep.subr.mxu0 0.0
    %1763 = vmatpush1.msra.mxu0 0.0
    %1764 = vmatprep.subr.mxu0 0.0
    %1765 = vmatpush1.msra.mxu0 0.0
    %1766 = vmatprep.subr.mxu0 0.0
    %1767 = vmatpush1.msra.mxu0 0.0
    %1768 = vmatprep.subr.mxu0 0.0
    %1769 = vmatpush1.msra.mxu0 0.0
    %1770 = vmatprep.subr.mxu0 0.0
    %1771 = vmatpush1.msra.mxu0 0.0
    %1772 = vmatprep.subr.mxu0 0.0
    %1773 = vmatpush1.msra.mxu0 0.0
    %1774 = vmatprep.subr.mxu0 0.0
    %1775 = vmatpush1.msra.mxu0 0.0
    %1776 = vmatprep.subr.mxu0 0.0
    %1777 = vmatpush1.msra.mxu0 0.0
    %1778 = vmatprep.subr.mxu0 0.0
    %1779 = vmatpush1.msra.mxu0 0.0
    %1780 = vmatprep.subr.mxu0 0.0
    %1781 = vmatpush1.msra.mxu0 0.0
    %1782 = vmatprep.subr.mxu0 0.0
    %1783 = vmatpush1.msra.mxu0 0.0
    %1784 = vmatprep.subr.mxu0 0.0
    %1785 = vmatpush1.msra.mxu0 %v1570
    %1786 = vmatprep.subr.mxu0 0.0
    %1787 = vmatpush2.msra.mxu0 0.0
    %1788 = vmatprep.subr.mxu0 0.0
    %1789 = vmatpush2.msra.mxu0 0.0
    %1790 = vmatprep.subr.mxu0 0.0
    %1791 = vmatpush2.msra.mxu0 0.0
    %1792 = vmatprep.subr.mxu0 0.0
    %1793 = vmatpush2.msra.mxu0 0.0
    %1794 = vmatprep.subr.mxu0 0.0
    %1795 = vmatpush2.msra.mxu0 0.0
    %1796 = vmatprep.subr.mxu0 0.0
    %1797 = vmatpush2.msra.mxu0 0.0
    %1798 = vmatprep.subr.mxu0 0.0
    %1799 = vmatpush2.msra.mxu0 0.0
    %1800 = vmatprep.subr.mxu0 0.0
    %1801 = vmatpush2.msra.mxu0 0.0
    %1802 = vmatprep.subr.mxu0 0.0
    %1803 = vmatpush2.msra.mxu0 0.0
    %1804 = vmatprep.subr.mxu0 0.0
    %1805 = vmatpush2.msra.mxu0 0.0
    %1806 = vmatprep.subr.mxu0 0.0
    %1807 = vmatpush2.msra.mxu0 0.0
    %1808 = vmatprep.subr.mxu0 0.0
    %1809 = vmatpush2.msra.mxu0 0.0
    %1810 = vmatprep.subr.mxu0 0.0
    %1811 = vmatpush2.msra.mxu0 0.0
    %1812 = vmatprep.subr.mxu0 0.0
    %1813 = vmatpush2.msra.mxu0 0.0
    %1814 = vmatprep.subr.mxu0 0.0
    %1815 = vmatpush2.msra.mxu0 0.0
    %1816 = vmatprep.subr.mxu0 0.0
    %1817 = vmatpush2.msra.mxu0 0.0
    %1818 = vmatprep.mubr.f32.mxu0 0.0
    %1819 = vmatmul.mubr.f32.gmra.mxu0 %v1752
    %v1820 = vpop.f32.mrf.mxu0
    %v1821 = vadd.f32 0.0, %v1820
    %v1822 = vpop.f32.mrf.mxu0
    %1823 = vdwg.mxu0
    %v1824 = vadd.f32 %v1142, %v1747
    %v1825 = vlog2.pop %v1821
    %v1826 = vmul.f32 %v1825, 0.6931472
    %v1827 = vadd.f32 %v1824, %v1826
    %v1828 = vmul.f32 %v1827, %v1258
    %1830 = vset.pattern.permute.xlu0 0
    %1831 = vperm.xlu0 %1830, %v1464
    %v1832 = vpop.permute.xlu0 %1831
    %v1834 = vmul.f32 %v1744, %v1832
    %v1835 = vadd.f32 %v1828, %v1834
    %v1836 = vsel %vm1288, %v1835, -inf
    %1837 = vmax.xlane.f32.xlu0 %v1836
    %v1838 = vpop.xlane.xlu0 %1837
    %v1839 = vsub.f32 %v1835, %v1838
    %v1840 = vmul.f32 %v1839, 1.442695
    %v1841 = vpow.pop %v1840
    %v1843 = vsel %vm1288, %v1841, 0
    %1845 = vmatprep.subr.mxu0 0.0
    %1846 = vmatpush1.msra.mxu0 0.0
    %1847 = vmatprep.subr.mxu0 0.0
    %1848 = vmatpush1.msra.mxu0 0.0
    %1849 = vmatprep.subr.mxu0 0.0
    %1850 = vmatpush1.msra.mxu0 0.0
    %1851 = vmatprep.subr.mxu0 0.0
    %1852 = vmatpush1.msra.mxu0 0.0
    %1853 = vmatprep.subr.mxu0 0.0
    %1854 = vmatpush1.msra.mxu0 0.0
    %1855 = vmatprep.subr.mxu0 0.0
    %1856 = vmatpush1.msra.mxu0 0.0
    %1857 = vmatprep.subr.mxu0 0.0
    %1858 = vmatpush1.msra.mxu0 0.0
    %1859 = vmatprep.subr.mxu0 0.0
    %1860 = vmatpush1.msra.mxu0 0.0
    %1861 = vmatprep.subr.mxu0 0.0
    %1862 = vmatpush1.msra.mxu0 0.0
    %1863 = vmatprep.subr.mxu0 0.0
    %1864 = vmatpush1.msra.mxu0 0.0
    %1865 = vmatprep.subr.mxu0 0.0
    %1866 = vmatpush1.msra.mxu0 0.0
    %1867 = vmatprep.subr.mxu0 0.0
    %1868 = vmatpush1.msra.mxu0 0.0
    %1869 = vmatprep.subr.mxu0 0.0
    %1870 = vmatpush1.msra.mxu0 0.0
    %1871 = vmatprep.subr.mxu0 0.0
    %1872 = vmatpush1.msra.mxu0 0.0
    %1873 = vmatprep.subr.mxu0 0.0
    %1874 = vmatpush1.msra.mxu0 0.0
    %1875 = vmatprep.subr.mxu0 0.0
    %1876 = vmatpush1.msra.mxu0 %v1570
    %1877 = vmatprep.subr.mxu0 0.0
    %1878 = vmatpush2.msra.mxu0 0.0
    %1879 = vmatprep.subr.mxu0 0.0
    %1880 = vmatpush2.msra.mxu0 0.0
    %1881 = vmatprep.subr.mxu0 0.0
    %1882 = vmatpush2.msra.mxu0 0.0
    %1883 = vmatprep.subr.mxu0 0.0
    %1884 = vmatpush2.msra.mxu0 0.0
    %1885 = vmatprep.subr.mxu0 0.0
    %1886 = vmatpush2.msra.mxu0 0.0
    %1887 = vmatprep.subr.mxu0 0.0
    %1888 = vmatpush2.msra.mxu0 0.0
    %1889 = vmatprep.subr.mxu0 0.0
    %1890 = vmatpush2.msra.mxu0 0.0
    %1891 = vmatprep.subr.mxu0 0.0
    %1892 = vmatpush2.msra.mxu0 0.0
    %1893 = vmatprep.subr.mxu0 0.0
    %1894 = vmatpush2.msra.mxu0 0.0
    %1895 = vmatprep.subr.mxu0 0.0
    %1896 = vmatpush2.msra.mxu0 0.0
    %1897 = vmatprep.subr.mxu0 0.0
    %1898 = vmatpush2.msra.mxu0 0.0
    %1899 = vmatprep.subr.mxu0 0.0
    %1900 = vmatpush2.msra.mxu0 0.0
    %1901 = vmatprep.subr.mxu0 0.0
    %1902 = vmatpush2.msra.mxu0 0.0
    %1903 = vmatprep.subr.mxu0 0.0
    %1904 = vmatpush2.msra.mxu0 0.0
    %1905 = vmatprep.subr.mxu0 0.0
    %1906 = vmatpush2.msra.mxu0 0.0
    %1907 = vmatprep.subr.mxu0 0.0
    %1908 = vmatpush2.msra.mxu0 0.0
    %1909 = vmatprep.mubr.f32.mxu0 0.0
    %1910 = vmatmul.mubr.f32.gmra.mxu0 %v1843
    %v1911 = vpop.f32.mrf.mxu0
    %v1912 = vadd.f32 0.0, %v1911
    %v1913 = vpop.f32.mrf.mxu0
    %1914 = vdwg.mxu0
    %v1915 = vadd.f32 %v1147, %v1838
    %v1916 = vlog2.pop %v1912
    %v1917 = vmul.f32 %v1916, 0.6931472
    %v1918 = vadd.f32 %v1915, %v1917
    %v1919 = vmul.f32 %v1918, %v1263
    %1921 = vset.pattern.permute.xlu0 0
    %1922 = vperm.xlu0 %1921, %v1465
    %v1923 = vpop.permute.xlu0 %1922
    %v1925 = vmul.f32 %v1835, %v1923
    %v1926 = vadd.f32 %v1919, %v1925
    %v1927 = vsel %vm1288, %v1926, -inf
    %1928 = vmax.xlane.f32.xlu0 %v1927
    %v1929 = vpop.xlane.xlu0 %1928
    %v1930 = vsub.f32 %v1926, %v1929
    %v1931 = vmul.f32 %v1930, 1.442695
    %v1932 = vpow.pop %v1931
    %v1934 = vsel %vm1288, %v1932, 0
    %1936 = vmatprep.subr.mxu0 0.0
    %1937 = vmatpush1.msra.mxu0 0.0
    %1938 = vmatprep.subr.mxu0 0.0
    %1939 = vmatpush1.msra.mxu0 0.0
    %1940 = vmatprep.subr.mxu0 0.0
    %1941 = vmatpush1.msra.mxu0 0.0
    %1942 = vmatprep.subr.mxu0 0.0
    %1943 = vmatpush1.msra.mxu0 0.0
    %1944 = vmatprep.subr.mxu0 0.0
    %1945 = vmatpush1.msra.mxu0 0.0
    %1946 = vmatprep.subr.mxu0 0.0
    %1947 = vmatpush1.msra.mxu0 0.0
    %1948 = vmatprep.subr.mxu0 0.0
    %1949 = vmatpush1.msra.mxu0 0.0
    %1950 = vmatprep.subr.mxu0 0.0
    %1951 = vmatpush1.msra.mxu0 0.0
    %1952 = vmatprep.subr.mxu0 0.0
    %1953 = vmatpush1.msra.mxu0 0.0
    %1954 = vmatprep.subr.mxu0 0.0
    %1955 = vmatpush1.msra.mxu0 0.0
    %1956 = vmatprep.subr.mxu0 0.0
    %1957 = vmatpush1.msra.mxu0 0.0
    %1958 = vmatprep.subr.mxu0 0.0
    %1959 = vmatpush1.msra.mxu0 0.0
    %1960 = vmatprep.subr.mxu0 0.0
    %1961 = vmatpush1.msra.mxu0 0.0
    %1962 = vmatprep.subr.mxu0 0.0
    %1963 = vmatpush1.msra.mxu0 0.0
    %1964 = vmatprep.subr.mxu0 0.0
    %1965 = vmatpush1.msra.mxu0 0.0
    %1966 = vmatprep.subr.mxu0 0.0
    %1967 = vmatpush1.msra.mxu0 %v1570
    %1968 = vmatprep.subr.mxu0 0.0
    %1969 = vmatpush2.msra.mxu0 0.0
    %1970 = vmatprep.subr.mxu0 0.0
    %1971 = vmatpush2.msra.mxu0 0.0
    %1972 = vmatprep.subr.mxu0 0.0
    %1973 = vmatpush2.msra.mxu0 0.0
    %1974 = vmatprep.subr.mxu0 0.0
    %1975 = vmatpush2.msra.mxu0 0.0
    %1976 = vmatprep.subr.mxu0 0.0
    %1977 = vmatpush2.msra.mxu0 0.0
    %1978 = vmatprep.subr.mxu0 0.0
    %1979 = vmatpush2.msra.mxu0 0.0
    %1980 = vmatprep.subr.mxu0 0.0
    %1981 = vmatpush2.msra.mxu0 0.0
    %1982 = vmatprep.subr.mxu0 0.0
    %1983 = vmatpush2.msra.mxu0 0.0
    %1984 = vmatprep.subr.mxu0 0.0
    %1985 = vmatpush2.msra.mxu0 0.0
    %1986 = vmatprep.subr.mxu0 0.0
    %1987 = vmatpush2.msra.mxu0 0.0
    %1988 = vmatprep.subr.mxu0 0.0
    %1989 = vmatpush2.msra.mxu0 0.0
    %1990 = vmatprep.subr.mxu0 0.0
    %1991 = vmatpush2.msra.mxu0 0.0
    %1992 = vmatprep.subr.mxu0 0.0
    %1993 = vmatpush2.msra.mxu0 0.0
    %1994 = vmatprep.subr.mxu0 0.0
    %1995 = vmatpush2.msra.mxu0 0.0
    %1996 = vmatprep.subr.mxu0 0.0
    %1997 = vmatpush2.msra.mxu0 0.0
    %1998 = vmatprep.subr.mxu0 0.0
    %1999 = vmatpush2.msra.mxu0 0.0
    %2000 = vmatprep.mubr.f32.mxu0 0.0
    %2001 = vmatmul.mubr.f32.gmra.mxu0 %v1934
    %v2002 = vpop.f32.mrf.mxu0
    %v2003 = vadd.f32 0.0, %v2002
    %v2004 = vpop.f32.mrf.mxu0
    %2005 = vdwg.mxu0
    %v2006 = vadd.f32 %v1152, %v1929
    %v2007 = vlog2.pop %v2003
    %v2008 = vmul.f32 %v2007, 0.6931472
    %v2009 = vadd.f32 %v2006, %v2008
    %v2010 = vmul.f32 %v2009, %v1268
    %2012 = vset.pattern.permute.xlu0 0
    %2013 = vperm.xlu0 %2012, %v1466
    %v2014 = vpop.permute.xlu0 %2013
    %v2016 = vmul.f32 %v1926, %v2014
    %v2017 = vadd.f32 %v2010, %v2016
    %v2018 = vsel %vm1288, %v2017, -inf
    %2019 = vmax.xlane.f32.xlu0 %v2018
    %v2020 = vpop.xlane.xlu0 %2019
    %v2021 = vsub.f32 %v2017, %v2020
    %v2022 = vmul.f32 %v2021, 1.442695
    %v2023 = vpow.pop %v2022
    %v2025 = vsel %vm1288, %v2023, 0
    %2027 = vmatprep.subr.mxu0 0.0
    %2028 = vmatpush1.msra.mxu0 0.0
    %2029 = vmatprep.subr.mxu0 0.0
    %2030 = vmatpush1.msra.mxu0 0.0
    %2031 = vmatprep.subr.mxu0 0.0
    %2032 = vmatpush1.msra.mxu0 0.0
    %2033 = vmatprep.subr.mxu0 0.0
    %2034 = vmatpush1.msra.mxu0 0.0
    %2035 = vmatprep.subr.mxu0 0.0
    %2036 = vmatpush1.msra.mxu0 0.0
    %2037 = vmatprep.subr.mxu0 0.0
    %2038 = vmatpush1.msra.mxu0 0.0
    %2039 = vmatprep.subr.mxu0 0.0
    %2040 = vmatpush1.msra.mxu0 0.0
    %2041 = vmatprep.subr.mxu0 0.0
    %2042 = vmatpush1.msra.mxu0 0.0
    %2043 = vmatprep.subr.mxu0 0.0
    %2044 = vmatpush1.msra.mxu0 0.0
    %2045 = vmatprep.subr.mxu0 0.0
    %2046 = vmatpush1.msra.mxu0 0.0
    %2047 = vmatprep.subr.mxu0 0.0
    %2048 = vmatpush1.msra.mxu0 0.0
    %2049 = vmatprep.subr.mxu0 0.0
    %2050 = vmatpush1.msra.mxu0 0.0
    %2051 = vmatprep.subr.mxu0 0.0
    %2052 = vmatpush1.msra.mxu0 0.0
    %2053 = vmatprep.subr.mxu0 0.0
    %2054 = vmatpush1.msra.mxu0 0.0
    %2055 = vmatprep.subr.mxu0 0.0
    %2056 = vmatpush1.msra.mxu0 0.0
    %2057 = vmatprep.subr.mxu0 0.0
    %2058 = vmatpush1.msra.mxu0 %v1570
    %2059 = vmatprep.subr.mxu0 0.0
    %2060 = vmatpush2.msra.mxu0 0.0
    %2061 = vmatprep.subr.mxu0 0.0
    %2062 = vmatpush2.msra.mxu0 0.0
    %2063 = vmatprep.subr.mxu0 0.0
    %2064 = vmatpush2.msra.mxu0 0.0
    %2065 = vmatprep.subr.mxu0 0.0
    %2066 = vmatpush2.msra.mxu0 0.0
    %2067 = vmatprep.subr.mxu0 0.0
    %2068 = vmatpush2.msra.mxu0 0.0
    %2069 = vmatprep.subr.mxu0 0.0
    %2070 = vmatpush2.msra.mxu0 0.0
    %2071 = vmatprep.subr.mxu0 0.0
    %2072 = vmatpush2.msra.mxu0 0.0
    %2073 = vmatprep.subr.mxu0 0.0
    %2074 = vmatpush2.msra.mxu0 0.0
    %2075 = vmatprep.subr.mxu0 0.0
    %2076 = vmatpush2.msra.mxu0 0.0
    %2077 = vmatprep.subr.mxu0 0.0
    %2078 = vmatpush2.msra.mxu0 0.0
    %2079 = vmatprep.subr.mxu0 0.0
    %2080 = vmatpush2.msra.mxu0 0.0
    %2081 = vmatprep.subr.mxu0 0.0
    %2082 = vmatpush2.msra.mxu0 0.0
    %2083 = vmatprep.subr.mxu0 0.0
    %2084 = vmatpush2.msra.mxu0 0.0
    %2085 = vmatprep.subr.mxu0 0.0
    %2086 = vmatpush2.msra.mxu0 0.0
    %2087 = vmatprep.subr.mxu0 0.0
    %2088 = vmatpush2.msra.mxu0 0.0
    %2089 = vmatprep.subr.mxu0 0.0
    %2090 = vmatpush2.msra.mxu0 0.0
    %2091 = vmatprep.mubr.f32.mxu0 0.0
    %2092 = vmatmul.mubr.f32.gmra.mxu0 %v2025
    %v2093 = vpop.f32.mrf.mxu0
    %v2094 = vadd.f32 0.0, %v2093
    %v2095 = vpop.f32.mrf.mxu0
    %2096 = vdwg.mxu0
    %v2097 = vadd.f32 %v1157, %v2020
    %v2098 = vlog2.pop %v2094
    %v2099 = vmul.f32 %v2098, 0.6931472
    %v2100 = vadd.f32 %v2097, %v2099
    %v2101 = vmul.f32 %v2100, %v1273
    %2103 = vset.pattern.permute.xlu0 0
    %2104 = vperm.xlu0 %2103, %v1467
    %v2105 = vpop.permute.xlu0 %2104
    %v2107 = vmul.f32 %v2017, %v2105
    %v2108 = vadd.f32 %v2101, %v2107
    %v2109 = vsel %vm1288, %v2108, -inf
    %2110 = vmax.xlane.f32.xlu0 %v2109
    %v2111 = vpop.xlane.xlu0 %2110
    %v2112 = vsub.f32 %v2108, %v2111
    %v2113 = vmul.f32 %v2112, 1.442695
    %v2114 = vpow.pop %v2113
    %v2116 = vsel %vm1288, %v2114, 0
    %2118 = vmatprep.subr.mxu0 0.0
    %2119 = vmatpush1.msra.mxu0 0.0
    %2120 = vmatprep.subr.mxu0 0.0
    %2121 = vmatpush1.msra.mxu0 0.0
    %2122 = vmatprep.subr.mxu0 0.0
    %2123 = vmatpush1.msra.mxu0 0.0
    %2124 = vmatprep.subr.mxu0 0.0
    %2125 = vmatpush1.msra.mxu0 0.0
    %2126 = vmatprep.subr.mxu0 0.0
    %2127 = vmatpush1.msra.mxu0 0.0
    %2128 = vmatprep.subr.mxu0 0.0
    %2129 = vmatpush1.msra.mxu0 0.0
    %2130 = vmatprep.subr.mxu0 0.0
    %2131 = vmatpush1.msra.mxu0 0.0
    %2132 = vmatprep.subr.mxu0 0.0
    %2133 = vmatpush1.msra.mxu0 0.0
    %2134 = vmatprep.subr.mxu0 0.0
    %2135 = vmatpush1.msra.mxu0 0.0
    %2136 = vmatprep.subr.mxu0 0.0
    %2137 = vmatpush1.msra.mxu0 0.0
    %2138 = vmatprep.subr.mxu0 0.0
    %2139 = vmatpush1.msra.mxu0 0.0
    %2140 = vmatprep.subr.mxu0 0.0
    %2141 = vmatpush1.msra.mxu0 0.0
    %2142 = vmatprep.subr.mxu0 0.0
    %2143 = vmatpush1.msra.mxu0 0.0
    %2144 = vmatprep.subr.mxu0 0.0
    %2145 = vmatpush1.msra.mxu0 0.0
    %2146 = vmatprep.subr.mxu0 0.0
    %2147 = vmatpush1.msra.mxu0 0.0
    %2148 = vmatprep.subr.mxu0 0.0
    %2149 = vmatpush1.msra.mxu0 %v1570
    %2150 = vmatprep.subr.mxu0 0.0
    %2151 = vmatpush2.msra.mxu0 0.0
    %2152 = vmatprep.subr.mxu0 0.0
    %2153 = vmatpush2.msra.mxu0 0.0
    %2154 = vmatprep.subr.mxu0 0.0
    %2155 = vmatpush2.msra.mxu0 0.0
    %2156 = vmatprep.subr.mxu0 0.0
    %2157 = vmatpush2.msra.mxu0 0.0
    %2158 = vmatprep.subr.mxu0 0.0
    %2159 = vmatpush2.msra.mxu0 0.0
    %2160 = vmatprep.subr.mxu0 0.0
    %2161 = vmatpush2.msra.mxu0 0.0
    %2162 = vmatprep.subr.mxu0 0.0
    %2163 = vmatpush2.msra.mxu0 0.0
    %2164 = vmatprep.subr.mxu0 0.0
    %2165 = vmatpush2.msra.mxu0 0.0
    %2166 = vmatprep.subr.mxu0 0.0
    %2167 = vmatpush2.msra.mxu0 0.0
    %2168 = vmatprep.subr.mxu0 0.0
    %2169 = vmatpush2.msra.mxu0 0.0
    %2170 = vmatprep.subr.mxu0 0.0
    %2171 = vmatpush2.msra.mxu0 0.0
    %2172 = vmatprep.subr.mxu0 0.0
    %2173 = vmatpush2.msra.mxu0 0.0
    %2174 = vmatprep.subr.mxu0 0.0
    %2175 = vmatpush2.msra.mxu0 0.0
    %2176 = vmatprep.subr.mxu0 0.0
    %2177 = vmatpush2.msra.mxu0 0.0
    %2178 = vmatprep.subr.mxu0 0.0
    %2179 = vmatpush2.msra.mxu0 0.0
    %2180 = vmatprep.subr.mxu0 0.0
    %2181 = vmatpush2.msra.mxu0 0.0
    %2182 = vmatprep.mubr.f32.mxu0 0.0
    %2183 = vmatmul.mubr.f32.gmra.mxu0 %v2116
    %v2184 = vpop.f32.mrf.mxu0
    %v2185 = vadd.f32 0.0, %v2184
    %v2186 = vpop.f32.mrf.mxu0
    %2187 = vdwg.mxu0
    %v2188 = vadd.f32 %v1162, %v2111
    %v2189 = vlog2.pop %v2185
    %v2190 = vmul.f32 %v2189, 0.6931472
    %v2191 = vadd.f32 %v2188, %v2190
    %v2192 = vmul.f32 %v2191, %v1278
    %2194 = vset.pattern.permute.xlu0 0
    %2195 = vperm.xlu0 %2194, %v1468
    %v2196 = vpop.permute.xlu0 %2195
    %v2198 = vmul.f32 %v2108, %v2196
    %v2199 = vadd.f32 %v2192, %v2198
    %v2200 = vadd.f32 %v2199, %v1548
    %v2201 = vsel %vm1288, %v2200, -inf
    %2202 = vmax.xlane.f32.xlu0 %v2201
    %v2203 = vpop.xlane.xlu0 %2202
    %v2204 = vsub.f32 %v2200, %v2203
    %v2205 = vmul.f32 %v2204, 1.442695
    %v2206 = vpow.pop %v2205
    %v2207 = vsel %vm1288, %v2206, 0.0
    %2208 = vadd.xlane.f32.xlu0 %v2207
    %v2209 = vpop.xlane.xlu0 %2208
    %v2210 = vlog2.pop %v2209
    %v2211 = vmul.f32 %v2210, 0.6931472
    %v2212 = vadd.f32 %v2203, %v2211
    %v2213 = vsub.f32 %v1556, %v2212
    %v2214 = vmul.f32 %v2213, %v1168
    %vm2215 = vcmask 7168
    %v2216 = vsel %vm2215, %v2214, 0.0
    %2217 = vadd.xlane.f32.xlu0 %v2216
    %v2218 = vpop.xlane.xlu0 %2217
    %v2219 = vrot.slane %v2218, 4
    %v2220 = vadd.f32 %v2218, %v2219
    %v2221 = vrot.slane %v2220, 2
    %v2222 = vadd.f32 %v2220, %v2221
    %v2223 = vrot.slane %v2222, 1
    %v2224 = vadd.f32 %v2222, %v2223
    %s2225 = vtos %v2224
    %s2226 = ssub.f32 0.0, %s2225
    %s2227 = scalar_lea.smem [#allocation3], 0
    %2228 = sst [smem:[%s2227]] %s2226
    // Predicated region
    $region50: #{bilstm_crf_forward.1} parent=1 // pred_check
      _
    $region51: #{bilstm_crf_forward.1} parent=1 // pred_check_branch
      %2230 = sbr.rel (0) target = $region53
    $region52: #{bilstm_crf_forward.1} parent=1 // pred_region
      %s2232 = ssub.s32 16, 16
      %2233 = vsyncadd [#allocation4], %s2232
      %2236 = dma.smem_to_hbm [#allocation3], 16, %s12, [#allocation4]
    $region53: #{bilstm_crf_forward.1} parent=1 // pred_fallthru
      _
    // Predicated region
    $region54: #{bilstm_crf_forward.1} parent=1 // pred_check
      _
    $region55: #{bilstm_crf_forward.1} parent=1 // pred_check_branch
      %2238 = sbr.rel (0) target = $region57
    $region56: #{bilstm_crf_forward.1} parent=1 // pred_region
      %2239 = dma.done [#allocation4], 16
    $region57: #{bilstm_crf_forward.1} parent=1 // pred_fallthru
      _
    %2240 = sfence
    %2241 = vsyncpa [#allocation4], 1

</llo_original>
